<compile_context>
chip_gen: v6e
topology: v6e:2x2x1
jax: 0.10.0
libtpu: 0.0.40
codegen_flags: <defaults>
</compile_context>

<pallas_src>
import functools

import jax
import jax.numpy as jnp
from jax.experimental import pallas as pl
from jax.experimental.pallas import tpu as pltpu

_EPS = 1e-5
_OFF = 8          # 8-aligned row offset of the activation inside the padded scratch
_LANE = 128


def _round_up(x, m):
    return (x + m - 1) // m * m


def _choose_btile(n, length):
    """Largest divisor of n giving M = Btile*L ~ 256, but keep >= 2 grid steps."""
    target = max(1, 256 // max(length, 1))
    bt = max(1, min(n, target))
    while n % bt:
        bt -= 1
    if n // bt < 2 and n >= 2:            # keep grid >= 2 for v7x's two TensorCores
        bt = max(1, n // 2)
        while n % bt:
            bt -= 1
    return bt


def _vmem_bytes(bt, length, cp, kss, conv_shortcut):
    act_blk = bt * length * cp * 2                      # bf16 in/out block
    w_bytes = sum(k * cp * cp * 2 + 2 * cp * 4 for k in kss)
    w_bytes += (cp * cp * 2 + 2 * cp * 4) if conv_shortcut else 2 * cp * 4
    scratch = bt * (length + 2 * _OFF) * cp * 2
    live = 6 * bt * length * cp * 4                     # f32 acc / h / sc working set
    est = 2 * (2 * act_blk) + 2 * w_bytes + scratch + live
    return int(min(max(2 * est, 16 * 1024 * 1024), 64 * 1024 * 1024))


# ----------------------------------------------------------------------------
# Fused ResBlock kernel: one grid step = Btile batch elements, fully in VMEM
# ----------------------------------------------------------------------------
def _resblock_kernel(*refs, kss, conv_shortcut, bt, length, cp):
    if conv_shortcut:
        (x_ref, w1, s1, b1, w2, s2, b2, w3, s3, b3,
         wsc, ssc, bsc, o_ref, xp_ref) = refs
    else:
        (x_ref, w1, s1, b1, w2, s2, b2, w3, s3, b3,
         ssc, bsc, o_ref, xp_ref) = refs
        wsc = None

    m = bt * length

    # Zero the 8-row halo bands (aligned stores) every step so 'same' padding
    # never bleeds across batch elements / grid steps (also keeps the scratch
    # valid when the grid axis is split across TensorCores).
    xp_ref[:, :_OFF, :] = jnp.zeros((bt, _OFF, cp), jnp.bfloat16)
    xp_ref[:, _OFF + length:, :] = jnp.zeros((bt, _OFF, cp), jnp.bfloat16)

    def conv_bn(w_ref, s_ref, sh_ref, k, act):
        # 'same' Conv1d (bias=False) + folded BN + optional ReLU.
        # K-tap form: K bf16 MXU matmuls of contraction cp, f32 accumulation.
        pad = (k - 1) // 2
        acc = jnp.zeros((m, cp), jnp.float32)
        for j in range(k):
            off = _OFF - pad + j
            xs = xp_ref[:, off:off + length, :].reshape(m, cp)   # bf16 tap
            acc = acc + jnp.dot(xs, w_ref[j], preferred_element_type=jnp.float32)
        y = acc * s_ref[...] + sh_ref[...]                        # f32 epilogue
        if act:
            y = jnp.maximum(y, 0.0)
        return y                                                  # (m, cp) f32

    # Stage the input at the aligned offset inside the padded scratch.
    xp_ref[:, _OFF:_OFF + length, :] = x_ref[...]
    h = conv_bn(w1, s1, b1, kss[0], True)
    xp_ref[:, _OFF:_OFF + length, :] = h.astype(jnp.bfloat16).reshape(bt, length, cp)
    h = conv_bn(w2, s2, b2, kss[1], True)
    xp_ref[:, _OFF:_OFF + length, :] = h.astype(jnp.bfloat16).reshape(bt, length, cp)
    h = conv_bn(w3, s3, b3, kss[2], False)

    # Shortcut path + residual add + ReLU, fused in the same epilogue.
    x = x_ref[...].reshape(m, cp)
    if conv_shortcut:                                 # ConvBlock(ni, nf, 1, act=None)
        sc = (jnp.dot(x, wsc[0], preferred_element_type=jnp.float32)
              * ssc[...] + bsc[...])
    else:                                             # BN1d(ni)
        sc = x.astype(jnp.float32) * ssc[...] + bsc[...]

    o_ref[...] = jnp.maximum(h + sc, 0.0).astype(o_ref.dtype).reshape(bt, length, cp)


# ----------------------------------------------------------------------------
# Parameter packing (channels padded to Cp, weights shipped as bf16)
# ----------------------------------------------------------------------------
def _pack_conv(cb, cp):
    k, ci, co = cb["w"].shape
    w = jnp.zeros((k, cp, cp), jnp.float32).at[:, :ci, :co].set(cb["w"])
    scale = jnp.zeros((1, cp), jnp.float32).at[0, :co].set(cb["scale"])
    shift = jnp.zeros((1, cp), jnp.float32).at[0, :co].set(cb["shift"])
    return w.astype(jnp.bfloat16), scale, shift


def _pack_bn(bn, c, cp):
    scale = jnp.zeros((1, cp), jnp.float32).at[0, :c].set(bn["scale"])
    shift = jnp.zeros((1, cp), jnp.float32).at[0, :c].set(bn["shift"])
    return scale, shift


# ----------------------------------------------------------------------------
# Core entry point: channel-padded, bf16, NLC layout (one pallas_call / block)
# ----------------------------------------------------------------------------
def res_block_nlc(x_nlc, params):
    """x_nlc: (N, L, Cp) bfloat16 with Cp = round_up(max(ni,nf), 128); channels
    beyond the real ones must be zero. Returns (N, L, Cp) bfloat16 (padded
    channels stay exactly zero)."""
    n, length, cp_in = x_nlc.shape
    kss = tuple(params["kss"])
    assert all(k % 2 == 1 for k in kss), "odd kernel sizes assumed ('same' pad)"
    assert max(kss) <= 2 * _OFF + 1
    ni = params["cb1"]["w"].shape[1]
    nf = params["cb1"]["w"].shape[2]
    cp = _round_up(max(ni, nf), _LANE)
    assert cp_in == cp, (cp_in, cp)
    conv_shortcut = params["shortcut_type"] == "conv"

    bt = _choose_btile(n, length)
    grid = (n // bt,)

    ins = [x_nlc]
    specs = [pl.BlockSpec((bt, length, cp), lambda i: (i, 0, 0))]

    def add_const(arr):                       # grid-invariant operand
        ins.append(arr)
        if arr.ndim == 3:
            specs.append(pl.BlockSpec(arr.shape, lambda i: (0, 0, 0)))
        else:
            specs.append(pl.BlockSpec(arr.shape, lambda i: (0, 0)))

    for name in ("cb1", "cb2", "cb3"):
        for a in _pack_conv(params[name], cp):
            add_const(a)
    if conv_shortcut:
        for a in _pack_conv(params["sc"], cp):
            add_const(a)
    else:
        for a in _pack_bn(params["sc"], ni, cp):
            add_const(a)

    kern = functools.partial(_resblock_kernel, kss=kss,
                             conv_shortcut=conv_shortcut,
                             bt=bt, length=length, cp=cp)

    return pl.pallas_call(
        kern,
        out_shape=jax.ShapeDtypeStruct((n, length, cp), jnp.bfloat16),
        grid=grid,
        in_specs=specs,
        out_specs=pl.BlockSpec((bt, length, cp), lambda i: (i, 0, 0)),
        scratch_shapes=[pltpu.VMEM((bt, length + 2 * _OFF, cp), jnp.bfloat16)],
        compiler_params=pltpu.CompilerParams(
            dimension_semantics=("parallel",),
            vmem_limit_bytes=_vmem_bytes(bt, length, cp, kss, conv_shortcut)),
    )(*ins)


# ----------------------------------------------------------------------------
# PyTorch-layout wrappers
# ----------------------------------------------------------------------------
def _to_nlc_padded(x_ncl, cp):
    n, c, length = x_ncl.shape
    x = jnp.transpose(x_ncl, (0, 2, 1))
    if c < cp:
        x = jnp.pad(x, ((0, 0), (0, 0), (0, cp - c)))
    return x.astype(jnp.bfloat16)


def _from_nlc_padded(y_nlc, nf):
    return jnp.transpose(y_nlc[:, :, :nf].astype(jnp.float32), (0, 2, 1))


def res_block(x_ncl, params):
    """Single ResBlock with PyTorch Conv1d layout: (N, Cin, L) f32 -> (N, nf, L) f32."""
    ni = params["cb1"]["w"].shape[1]
    nf = params["cb1"]["w"].shape[2]
    cp = _round_up(max(ni, nf), _LANE)
    return _from_nlc_padded(res_block_nlc(_to_nlc_padded(x_ncl, cp), params), nf)


def res_block_stack(x_ncl, params_list):
    """Chain ResBlocks keeping the bf16, channel-padded NLC layout between blocks
    (no per-block NCL<->NLC transposes / f32 HBM round trips)."""
    p0 = params_list[0]
    cp = _round_up(max(p0["cb1"]["w"].shape[1], p0["cb1"]["w"].shape[2]), _LANE)
    x = _to_nlc_padded(x_ncl, cp)
    for p in params_list:
        cp_blk = _round_up(max(p["cb1"]["w"].shape[1], p["cb1"]["w"].shape[2]), _LANE)
        c = x.shape[-1]
        if c < cp_blk:
            x = jnp.pad(x, ((0, 0), (0, 0), (0, cp_blk - c)))
        elif c > cp_blk:
            x = x[:, :, :cp_blk]
        x = res_block_nlc(x, p)
    return _from_nlc_padded(x, params_list[-1]["cb1"]["w"].shape[2])


# ----------------------------------------------------------------------------
# Deterministic synthetic parameters (BN folded to inference scale/shift)
# ----------------------------------------------------------------------------
def _convblock_params(key, cin, cout, k):
    kw, kg, kb = jax.random.split(key, 3)
    w = jax.random.normal(kw, (k, cin, cout), jnp.float32) / jnp.sqrt(float(cin * k))
    gamma = 1.0 + 0.1 * jax.random.normal(kg, (cout,), jnp.float32)
    beta = 0.1 * jax.random.normal(kb, (cout,), jnp.float32)
    mean = jnp.zeros((cout,), jnp.float32)
    var = jnp.ones((cout,), jnp.float32)
    scale = gamma / jnp.sqrt(var + _EPS)              # Conv1d bias=False
    shift = beta - mean * scale
    return {"w": w, "scale": scale, "shift": shift}


def _bn_params(key, c):
    kg, kb = jax.random.split(key, 2)
    gamma = 1.0 + 0.1 * jax.random.normal(kg, (c,), jnp.float32)
    beta = 0.1 * jax.random.normal(kb, (c,), jnp.float32)
    return {"scale": gamma / jnp.sqrt(1.0 + _EPS), "shift": beta}


def make_resblock_params(key, ni, nf, kss=(7, 5, 3)):
    k1, k2, k3, k4 = jax.random.split(key, 4)
    p = {"kss": tuple(kss),
         "cb1": _convblock_params(k1, ni, nf, kss[0]),
         "cb2": _convblock_params(k2, nf, nf, kss[1]),
         "cb3": _convblock_params(k3, nf, nf, kss[2])}
    if ni == nf:
        p["shortcut_type"] = "bn"
        p["sc"] = _bn_params(k4, ni)
    else:
        p["shortcut_type"] = "conv"
        p["sc"] = _convblock_params(k4, ni, nf, 1)
    return p


# ----------------------------------------------------------------------------
# Pure-JAX (f32) reference for correctness checking
# ----------------------------------------------------------------------------
def res_block_ref(x_ncl, params):
    x = jnp.transpose(x_ncl, (0, 2, 1))

    def cb(x, p, act):
        k = p["w"].shape[0]
        pad = (k - 1) // 2
        length = x.shape[1]
        xp = jnp.pad(x, ((0, 0), (pad, k - 1 - pad), (0, 0)))
        y = sum(jnp.einsum("nlc,cd->nld", xp[:, j:j + length, :], p["w"][j])
                for j in range(k))
        y = y * p["scale"] + p["shift"]
        return jnp.maximum(y, 0.0) if act else y

    h = cb(x, params["cb1"], True)
    h = cb(h, params["cb2"], True)
    h = cb(h, params["cb3"], False)
    if params["shortcut_type"] == "conv":
        s = cb(x, params["sc"], False)
    else:
        s = x * params["sc"]["scale"] + params["sc"]["shift"]
    return jnp.transpose(jnp.maximum(h + s, 0.0), (0, 2, 1))


# ----------------------------------------------------------------------------
if __name__ == "__main__":
    N, C_IN, L, NF = 2, 4, 16, 64
    root = jax.random.PRNGKey(0)
    kp1, kp2, kx = jax.random.split(root, 3)

    params1 = make_resblock_params(kp1, C_IN, NF)     # ni != nf -> conv shortcut
    params2 = make_resblock_params(kp2, NF, NF)       # ni == nf -> BN shortcut
    x = jax.random.normal(kx, (N, C_IN, L), jnp.float32)   # NCL (torch Conv1d)

    y1 = res_block(x, params1)                        # single block, (N, NF, L)
    y2 = res_block_stack(x, [params1, params2])       # chained in bf16 NLC layout
    y2 = jax.block_until_ready(y2)

    assert y1.shape == (N, NF, L), y1.shape
    assert y2.shape == (N, NF, L), y2.shape
    assert bool(jnp.all(jnp.isfinite(y2)))

    # bf16 activations / matmuls with f32 accumulation -> loose tolerance vs f32.
    r1 = res_block_ref(x, params1)
    r2 = res_block_ref(y1, params2)
    assert jnp.allclose(y1, r1, rtol=5e-2, atol=5e-2), float(jnp.max(jnp.abs(y1 - r1)))
    assert jnp.allclose(y2, r2, rtol=5e-2, atol=5e-2), float(jnp.max(jnp.abs(y2 - r2)))

    print("KERNEL_OK")
</pallas_src>

<mosaic_0001>
module attributes {stable_mosaic.version = 11 : i64} {
  func.func @_resblock_kernel(%arg0: i32, %arg1: memref<1x16x128xbf16, #tpu.memory_space<vmem>>, %arg2: memref<7x128x128xbf16, #tpu.memory_space<vmem>>, %arg3: memref<1x128xf32, #tpu.memory_space<vmem>>, %arg4: memref<1x128xf32, #tpu.memory_space<vmem>>, %arg5: memref<5x128x128xbf16, #tpu.memory_space<vmem>>, %arg6: memref<1x128xf32, #tpu.memory_space<vmem>>, %arg7: memref<1x128xf32, #tpu.memory_space<vmem>>, %arg8: memref<3x128x128xbf16, #tpu.memory_space<vmem>>, %arg9: memref<1x128xf32, #tpu.memory_space<vmem>>, %arg10: memref<1x128xf32, #tpu.memory_space<vmem>>, %arg11: memref<1x128x128xbf16, #tpu.memory_space<vmem>>, %arg12: memref<1x128xf32, #tpu.memory_space<vmem>>, %arg13: memref<1x128xf32, #tpu.memory_space<vmem>>, %arg14: memref<1x16x128xbf16, #tpu.memory_space<vmem>>, %arg15: memref<1x32x128xbf16, #tpu.memory_space<vmem>>) attributes {dimension_semantics = [#tpu.dimension_semantics<parallel>], iteration_bounds = array<i64: 2>, scalar_prefetch = 0 : i64, scratch_operands = 1 : i64, tpu.core_type = #tpu.core_type<tc>, window_params = [{transform_indices = @transform_0, window_bounds = array<i64: 1, 16, 128>}, {pipeline_mode = #tpu.pipeline_mode<synchronous>, transform_indices = @transform_1, window_bounds = array<i64: 7, 128, 128>}, {pipeline_mode = #tpu.pipeline_mode<synchronous>, transform_indices = @transform_2, window_bounds = array<i64: 1, 128>}, {pipeline_mode = #tpu.pipeline_mode<synchronous>, transform_indices = @transform_3, window_bounds = array<i64: 1, 128>}, {pipeline_mode = #tpu.pipeline_mode<synchronous>, transform_indices = @transform_4, window_bounds = array<i64: 5, 128, 128>}, {pipeline_mode = #tpu.pipeline_mode<synchronous>, transform_indices = @transform_5, window_bounds = array<i64: 1, 128>}, {pipeline_mode = #tpu.pipeline_mode<synchronous>, transform_indices = @transform_6, window_bounds = array<i64: 1, 128>}, {pipeline_mode = #tpu.pipeline_mode<synchronous>, transform_indices = @transform_7, window_bounds = array<i64: 3, 128, 128>}, {pipeline_mode = #tpu.pipeline_mode<synchronous>, transform_indices = @transform_8, window_bounds = array<i64: 1, 128>}, {pipeline_mode = #tpu.pipeline_mode<synchronous>, transform_indices = @transform_9, window_bounds = array<i64: 1, 128>}, {pipeline_mode = #tpu.pipeline_mode<synchronous>, transform_indices = @transform_10, window_bounds = array<i64: 1, 128, 128>}, {pipeline_mode = #tpu.pipeline_mode<synchronous>, transform_indices = @transform_11, window_bounds = array<i64: 1, 128>}, {pipeline_mode = #tpu.pipeline_mode<synchronous>, transform_indices = @transform_12, window_bounds = array<i64: 1, 128>}, {transform_indices = @transform_13, window_bounds = array<i64: 1, 16, 128>}]} {
    %cst = arith.constant 0.000000e+00 : bf16
    %0 = vector.broadcast %cst : bf16 to vector<1x8x128xbf16>
    %c0 = arith.constant 0 : index
    %c0_0 = arith.constant 0 : index
    %c0_1 = arith.constant 0 : index
    %1 = vector.load %arg15[%c0, %c0_0, %c0_1] : memref<1x32x128xbf16, #tpu.memory_space<vmem>>, vector<1x8x128xbf16>
    tpu.vector_store %arg15[%c0, %c0_0, %c0_1], %0 {strides = array<i32>} : memref<1x32x128xbf16, #tpu.memory_space<vmem>>, vector<1x8x128xbf16>,
    %cst_2 = arith.constant 0.000000e+00 : bf16
    %2 = vector.broadcast %cst_2 : bf16 to vector<1x8x128xbf16>
    %c0_3 = arith.constant 0 : index
    %c24 = arith.constant 24 : index
    %c0_4 = arith.constant 0 : index
    %3 = vector.load %arg15[%c0_3, %c24, %c0_4] : memref<1x32x128xbf16, #tpu.memory_space<vmem>>, vector<1x8x128xbf16>
    tpu.vector_store %arg15[%c0_3, %c24, %c0_4], %2 {strides = array<i32>} : memref<1x32x128xbf16, #tpu.memory_space<vmem>>, vector<1x8x128xbf16>,
    %c0_5 = arith.constant 0 : index
    %c0_6 = arith.constant 0 : index
    %c0_7 = arith.constant 0 : index
    %4 = vector.load %arg1[%c0_5, %c0_6, %c0_7] : memref<1x16x128xbf16, #tpu.memory_space<vmem>>, vector<1x16x128xbf16>
    %c0_8 = arith.constant 0 : index
    %c8 = arith.constant 8 : index
    %c0_9 = arith.constant 0 : index
    %5 = vector.load %arg15[%c0_8, %c8, %c0_9] : memref<1x32x128xbf16, #tpu.memory_space<vmem>>, vector<1x16x128xbf16>
    tpu.vector_store %arg15[%c0_8, %c8, %c0_9], %4 {strides = array<i32>} : memref<1x32x128xbf16, #tpu.memory_space<vmem>>, vector<1x16x128xbf16>,
    %cst_10 = arith.constant 0.000000e+00 : f32
    %6 = vector.broadcast %cst_10 : f32 to vector<16x128xf32>
    %c0_11 = arith.constant 0 : index
    %c5 = arith.constant 5 : index
    %c0_12 = arith.constant 0 : index
    %7 = vector.load %arg15[%c0_11, %c5, %c0_12] : memref<1x32x128xbf16, #tpu.memory_space<vmem>>, vector<1x16x128xbf16>
    %8 = vector.shape_cast %7 : vector<1x16x128xbf16> to vector<16x128xbf16>
    %c0_13 = arith.constant 0 : index
    %c0_14 = arith.constant 0 : index
    %c0_15 = arith.constant 0 : index
    %9 = vector.load %arg2[%c0_13, %c0_14, %c0_15] : memref<7x128x128xbf16, #tpu.memory_space<vmem>>, vector<1x128x128xbf16>
    %10 = vector.shape_cast %9 : vector<1x128x128xbf16> to vector<128x128xbf16>
    %cst_16 = arith.constant dense<0.000000e+00> : vector<16x128xf32>
    %11 = tpu.matmul %8, %10, %cst_16 {dimension_numbers = #tpu.dot_dimension_numbers<[1], [0], [0], [1], [0, 0, 1, 1], [], []>} : vector<16x128xbf16>, vector<128x128xbf16>, vector<16x128xf32> -> vector<16x128xf32>
    %12 = arith.addf %6, %11 : vector<16x128xf32>
    %c0_17 = arith.constant 0 : index
    %c6 = arith.constant 6 : index
    %c0_18 = arith.constant 0 : index
    %13 = vector.load %arg15[%c0_17, %c6, %c0_18] : memref<1x32x128xbf16, #tpu.memory_space<vmem>>, vector<1x16x128xbf16>
    %14 = vector.shape_cast %13 : vector<1x16x128xbf16> to vector<16x128xbf16>
    %c1 = arith.constant 1 : index
    %c0_19 = arith.constant 0 : index
    %c0_20 = arith.constant 0 : index
    %15 = vector.load %arg2[%c1, %c0_19, %c0_20] : memref<7x128x128xbf16, #tpu.memory_space<vmem>>, vector<1x128x128xbf16>
    %16 = vector.shape_cast %15 : vector<1x128x128xbf16> to vector<128x128xbf16>
    %cst_21 = arith.constant dense<0.000000e+00> : vector<16x128xf32>
    %17 = tpu.matmul %14, %16, %cst_21 {dimension_numbers = #tpu.dot_dimension_numbers<[1], [0], [0], [1], [0, 0, 1, 1], [], []>} : vector<16x128xbf16>, vector<128x128xbf16>, vector<16x128xf32> -> vector<16x128xf32>
    %18 = arith.addf %12, %17 : vector<16x128xf32>
    %c0_22 = arith.constant 0 : index
    %c7 = arith.constant 7 : index
    %c0_23 = arith.constant 0 : index
    %19 = vector.load %arg15[%c0_22, %c7, %c0_23] : memref<1x32x128xbf16, #tpu.memory_space<vmem>>, vector<1x16x128xbf16>
    %20 = vector.shape_cast %19 : vector<1x16x128xbf16> to vector<16x128xbf16>
    %c2 = arith.constant 2 : index
    %c0_24 = arith.constant 0 : index
    %c0_25 = arith.constant 0 : index
    %21 = vector.load %arg2[%c2, %c0_24, %c0_25] : memref<7x128x128xbf16, #tpu.memory_space<vmem>>, vector<1x128x128xbf16>
    %22 = vector.shape_cast %21 : vector<1x128x128xbf16> to vector<128x128xbf16>
    %cst_26 = arith.constant dense<0.000000e+00> : vector<16x128xf32>
    %23 = tpu.matmul %20, %22, %cst_26 {dimension_numbers = #tpu.dot_dimension_numbers<[1], [0], [0], [1], [0, 0, 1, 1], [], []>} : vector<16x128xbf16>, vector<128x128xbf16>, vector<16x128xf32> -> vector<16x128xf32>
    %24 = arith.addf %18, %23 : vector<16x128xf32>
    %c0_27 = arith.constant 0 : index
    %c8_28 = arith.constant 8 : index
    %c0_29 = arith.constant 0 : index
    %25 = vector.load %arg15[%c0_27, %c8_28, %c0_29] : memref<1x32x128xbf16, #tpu.memory_space<vmem>>, vector<1x16x128xbf16>
    %26 = vector.shape_cast %25 : vector<1x16x128xbf16> to vector<16x128xbf16>
    %c3 = arith.constant 3 : index
    %c0_30 = arith.constant 0 : index
    %c0_31 = arith.constant 0 : index
    %27 = vector.load %arg2[%c3, %c0_30, %c0_31] : memref<7x128x128xbf16, #tpu.memory_space<vmem>>, vector<1x128x128xbf16>
    %28 = vector.shape_cast %27 : vector<1x128x128xbf16> to vector<128x128xbf16>
    %cst_32 = arith.constant dense<0.000000e+00> : vector<16x128xf32>
    %29 = tpu.matmul %26, %28, %cst_32 {dimension_numbers = #tpu.dot_dimension_numbers<[1], [0], [0], [1], [0, 0, 1, 1], [], []>} : vector<16x128xbf16>, vector<128x128xbf16>, vector<16x128xf32> -> vector<16x128xf32>
    %30 = arith.addf %24, %29 : vector<16x128xf32>
    %c0_33 = arith.constant 0 : index
    %c9 = arith.constant 9 : index
    %c0_34 = arith.constant 0 : index
    %31 = vector.load %arg15[%c0_33, %c9, %c0_34] : memref<1x32x128xbf16, #tpu.memory_space<vmem>>, vector<1x16x128xbf16>
    %32 = vector.shape_cast %31 : vector<1x16x128xbf16> to vector<16x128xbf16>
    %c4 = arith.constant 4 : index
    %c0_35 = arith.constant 0 : index
    %c0_36 = arith.constant 0 : index
    %33 = vector.load %arg2[%c4, %c0_35, %c0_36] : memref<7x128x128xbf16, #tpu.memory_space<vmem>>, vector<1x128x128xbf16>
    %34 = vector.shape_cast %33 : vector<1x128x128xbf16> to vector<128x128xbf16>
    %cst_37 = arith.constant dense<0.000000e+00> : vector<16x128xf32>
    %35 = tpu.matmul %32, %34, %cst_37 {dimension_numbers = #tpu.dot_dimension_numbers<[1], [0], [0], [1], [0, 0, 1, 1], [], []>} : vector<16x128xbf16>, vector<128x128xbf16>, vector<16x128xf32> -> vector<16x128xf32>
    %36 = arith.addf %30, %35 : vector<16x128xf32>
    %c0_38 = arith.constant 0 : index
    %c10 = arith.constant 10 : index
    %c0_39 = arith.constant 0 : index
    %37 = vector.load %arg15[%c0_38, %c10, %c0_39] : memref<1x32x128xbf16, #tpu.memory_space<vmem>>, vector<1x16x128xbf16>
    %38 = vector.shape_cast %37 : vector<1x16x128xbf16> to vector<16x128xbf16>
    %c5_40 = arith.constant 5 : index
    %c0_41 = arith.constant 0 : index
    %c0_42 = arith.constant 0 : index
    %39 = vector.load %arg2[%c5_40, %c0_41, %c0_42] : memref<7x128x128xbf16, #tpu.memory_space<vmem>>, vector<1x128x128xbf16>
    %40 = vector.shape_cast %39 : vector<1x128x128xbf16> to vector<128x128xbf16>
    %cst_43 = arith.constant dense<0.000000e+00> : vector<16x128xf32>
    %41 = tpu.matmul %38, %40, %cst_43 {dimension_numbers = #tpu.dot_dimension_numbers<[1], [0], [0], [1], [0, 0, 1, 1], [], []>} : vector<16x128xbf16>, vector<128x128xbf16>, vector<16x128xf32> -> vector<16x128xf32>
    %42 = arith.addf %36, %41 : vector<16x128xf32>
    %c0_44 = arith.constant 0 : index
    %c11 = arith.constant 11 : index
    %c0_45 = arith.constant 0 : index
    %43 = vector.load %arg15[%c0_44, %c11, %c0_45] : memref<1x32x128xbf16, #tpu.memory_space<vmem>>, vector<1x16x128xbf16>
    %44 = vector.shape_cast %43 : vector<1x16x128xbf16> to vector<16x128xbf16>
    %c6_46 = arith.constant 6 : index
    %c0_47 = arith.constant 0 : index
    %c0_48 = arith.constant 0 : index
    %45 = vector.load %arg2[%c6_46, %c0_47, %c0_48] : memref<7x128x128xbf16, #tpu.memory_space<vmem>>, vector<1x128x128xbf16>
    %46 = vector.shape_cast %45 : vector<1x128x128xbf16> to vector<128x128xbf16>
    %cst_49 = arith.constant dense<0.000000e+00> : vector<16x128xf32>
    %47 = tpu.matmul %44, %46, %cst_49 {dimension_numbers = #tpu.dot_dimension_numbers<[1], [0], [0], [1], [0, 0, 1, 1], [], []>} : vector<16x128xbf16>, vector<128x128xbf16>, vector<16x128xf32> -> vector<16x128xf32>
    %48 = arith.addf %42, %47 : vector<16x128xf32>
    %c0_50 = arith.constant 0 : index
    %c0_51 = arith.constant 0 : index
    %49 = vector.load %arg3[%c0_50, %c0_51] : memref<1x128xf32, #tpu.memory_space<vmem>>, vector<1x128xf32>
    %50 = vector.broadcast %49 : vector<1x128xf32> to vector<16x128xf32>
    %51 = arith.mulf %48, %50 : vector<16x128xf32>
    %c0_52 = arith.constant 0 : index
    %c0_53 = arith.constant 0 : index
    %52 = vector.load %arg4[%c0_52, %c0_53] : memref<1x128xf32, #tpu.memory_space<vmem>>, vector<1x128xf32>
    %53 = vector.broadcast %52 : vector<1x128xf32> to vector<16x128xf32>
    %54 = arith.addf %51, %53 : vector<16x128xf32>
    %cst_54 = arith.constant 0.000000e+00 : f32
    %55 = vector.broadcast %cst_54 : f32 to vector<16x128xf32>
    %56 = arith.maximumf %54, %55 : vector<16x128xf32>
    %57 = arith.truncf %56 : vector<16x128xf32> to vector<16x128xbf16>
    %58 = vector.shape_cast %57 : vector<16x128xbf16> to vector<1x16x128xbf16>
    %c0_55 = arith.constant 0 : index
    %c8_56 = arith.constant 8 : index
    %c0_57 = arith.constant 0 : index
    %59 = vector.load %arg15[%c0_55, %c8_56, %c0_57] : memref<1x32x128xbf16, #tpu.memory_space<vmem>>, vector<1x16x128xbf16>
    tpu.vector_store %arg15[%c0_55, %c8_56, %c0_57], %58 {strides = array<i32>} : memref<1x32x128xbf16, #tpu.memory_space<vmem>>, vector<1x16x128xbf16>,
    %cst_58 = arith.constant 0.000000e+00 : f32
    %60 = vector.broadcast %cst_58 : f32 to vector<16x128xf32>
    %c0_59 = arith.constant 0 : index
    %c6_60 = arith.constant 6 : index
    %c0_61 = arith.constant 0 : index
    %61 = vector.load %arg15[%c0_59, %c6_60, %c0_61] : memref<1x32x128xbf16, #tpu.memory_space<vmem>>, vector<1x16x128xbf16>
    %62 = vector.shape_cast %61 : vector<1x16x128xbf16> to vector<16x128xbf16>
    %c0_62 = arith.constant 0 : index
    %c0_63 = arith.constant 0 : index
    %c0_64 = arith.constant 0 : index
    %63 = vector.load %arg5[%c0_62, %c0_63, %c0_64] : memref<5x128x128xbf16, #tpu.memory_space<vmem>>, vector<1x128x128xbf16>
    %64 = vector.shape_cast %63 : vector<1x128x128xbf16> to vector<128x128xbf16>
    %cst_65 = arith.constant dense<0.000000e+00> : vector<16x128xf32>
    %65 = tpu.matmul %62, %64, %cst_65 {dimension_numbers = #tpu.dot_dimension_numbers<[1], [0], [0], [1], [0, 0, 1, 1], [], []>} : vector<16x128xbf16>, vector<128x128xbf16>, vector<16x128xf32> -> vector<16x128xf32>
    %66 = arith.addf %60, %65 : vector<16x128xf32>
    %c0_66 = arith.constant 0 : index
    %c7_67 = arith.constant 7 : index
    %c0_68 = arith.constant 0 : index
    %67 = vector.load %arg15[%c0_66, %c7_67, %c0_68] : memref<1x32x128xbf16, #tpu.memory_space<vmem>>, vector<1x16x128xbf16>
    %68 = vector.shape_cast %67 : vector<1x16x128xbf16> to vector<16x128xbf16>
    %c1_69 = arith.constant 1 : index
    %c0_70 = arith.constant 0 : index
    %c0_71 = arith.constant 0 : index
    %69 = vector.load %arg5[%c1_69, %c0_70, %c0_71] : memref<5x128x128xbf16, #tpu.memory_space<vmem>>, vector<1x128x128xbf16>
    %70 = vector.shape_cast %69 : vector<1x128x128xbf16> to vector<128x128xbf16>
    %cst_72 = arith.constant dense<0.000000e+00> : vector<16x128xf32>
    %71 = tpu.matmul %68, %70, %cst_72 {dimension_numbers = #tpu.dot_dimension_numbers<[1], [0], [0], [1], [0, 0, 1, 1], [], []>} : vector<16x128xbf16>, vector<128x128xbf16>, vector<16x128xf32> -> vector<16x128xf32>
    %72 = arith.addf %66, %71 : vector<16x128xf32>
    %c0_73 = arith.constant 0 : index
    %c8_74 = arith.constant 8 : index
    %c0_75 = arith.constant 0 : index
    %73 = vector.load %arg15[%c0_73, %c8_74, %c0_75] : memref<1x32x128xbf16, #tpu.memory_space<vmem>>, vector<1x16x128xbf16>
    %74 = vector.shape_cast %73 : vector<1x16x128xbf16> to vector<16x128xbf16>
    %c2_76 = arith.constant 2 : index
    %c0_77 = arith.constant 0 : index
    %c0_78 = arith.constant 0 : index
    %75 = vector.load %arg5[%c2_76, %c0_77, %c0_78] : memref<5x128x128xbf16, #tpu.memory_space<vmem>>, vector<1x128x128xbf16>
    %76 = vector.shape_cast %75 : vector<1x128x128xbf16> to vector<128x128xbf16>
    %cst_79 = arith.constant dense<0.000000e+00> : vector<16x128xf32>
    %77 = tpu.matmul %74, %76, %cst_79 {dimension_numbers = #tpu.dot_dimension_numbers<[1], [0], [0], [1], [0, 0, 1, 1], [], []>} : vector<16x128xbf16>, vector<128x128xbf16>, vector<16x128xf32> -> vector<16x128xf32>
    %78 = arith.addf %72, %77 : vector<16x128xf32>
    %c0_80 = arith.constant 0 : index
    %c9_81 = arith.constant 9 : index
    %c0_82 = arith.constant 0 : index
    %79 = vector.load %arg15[%c0_80, %c9_81, %c0_82] : memref<1x32x128xbf16, #tpu.memory_space<vmem>>, vector<1x16x128xbf16>
    %80 = vector.shape_cast %79 : vector<1x16x128xbf16> to vector<16x128xbf16>
    %c3_83 = arith.constant 3 : index
    %c0_84 = arith.constant 0 : index
    %c0_85 = arith.constant 0 : index
    %81 = vector.load %arg5[%c3_83, %c0_84, %c0_85] : memref<5x128x128xbf16, #tpu.memory_space<vmem>>, vector<1x128x128xbf16>
    %82 = vector.shape_cast %81 : vector<1x128x128xbf16> to vector<128x128xbf16>
    %cst_86 = arith.constant dense<0.000000e+00> : vector<16x128xf32>
    %83 = tpu.matmul %80, %82, %cst_86 {dimension_numbers = #tpu.dot_dimension_numbers<[1], [0], [0], [1], [0, 0, 1, 1], [], []>} : vector<16x128xbf16>, vector<128x128xbf16>, vector<16x128xf32> -> vector<16x128xf32>
    %84 = arith.addf %78, %83 : vector<16x128xf32>
    %c0_87 = arith.constant 0 : index
    %c10_88 = arith.constant 10 : index
    %c0_89 = arith.constant 0 : index
    %85 = vector.load %arg15[%c0_87, %c10_88, %c0_89] : memref<1x32x128xbf16, #tpu.memory_space<vmem>>, vector<1x16x128xbf16>
    %86 = vector.shape_cast %85 : vector<1x16x128xbf16> to vector<16x128xbf16>
    %c4_90 = arith.constant 4 : index
    %c0_91 = arith.constant 0 : index
    %c0_92 = arith.constant 0 : index
    %87 = vector.load %arg5[%c4_90, %c0_91, %c0_92] : memref<5x128x128xbf16, #tpu.memory_space<vmem>>, vector<1x128x128xbf16>
    %88 = vector.shape_cast %87 : vector<1x128x128xbf16> to vector<128x128xbf16>
    %cst_93 = arith.constant dense<0.000000e+00> : vector<16x128xf32>
    %89 = tpu.matmul %86, %88, %cst_93 {dimension_numbers = #tpu.dot_dimension_numbers<[1], [0], [0], [1], [0, 0, 1, 1], [], []>} : vector<16x128xbf16>, vector<128x128xbf16>, vector<16x128xf32> -> vector<16x128xf32>
    %90 = arith.addf %84, %89 : vector<16x128xf32>
    %c0_94 = arith.constant 0 : index
    %c0_95 = arith.constant 0 : index
    %91 = vector.load %arg6[%c0_94, %c0_95] : memref<1x128xf32, #tpu.memory_space<vmem>>, vector<1x128xf32>
    %92 = vector.broadcast %91 : vector<1x128xf32> to vector<16x128xf32>
    %93 = arith.mulf %90, %92 : vector<16x128xf32>
    %c0_96 = arith.constant 0 : index
    %c0_97 = arith.constant 0 : index
    %94 = vector.load %arg7[%c0_96, %c0_97] : memref<1x128xf32, #tpu.memory_space<vmem>>, vector<1x128xf32>
    %95 = vector.broadcast %94 : vector<1x128xf32> to vector<16x128xf32>
    %96 = arith.addf %93, %95 : vector<16x128xf32>
    %cst_98 = arith.constant 0.000000e+00 : f32
    %97 = vector.broadcast %cst_98 : f32 to vector<16x128xf32>
    %98 = arith.maximumf %96, %97 : vector<16x128xf32>
    %99 = arith.truncf %98 : vector<16x128xf32> to vector<16x128xbf16>
    %100 = vector.shape_cast %99 : vector<16x128xbf16> to vector<1x16x128xbf16>
    %c0_99 = arith.constant 0 : index
    %c8_100 = arith.constant 8 : index
    %c0_101 = arith.constant 0 : index
    %101 = vector.load %arg15[%c0_99, %c8_100, %c0_101] : memref<1x32x128xbf16, #tpu.memory_space<vmem>>, vector<1x16x128xbf16>
    tpu.vector_store %arg15[%c0_99, %c8_100, %c0_101], %100 {strides = array<i32>} : memref<1x32x128xbf16, #tpu.memory_space<vmem>>, vector<1x16x128xbf16>,
    %cst_102 = arith.constant 0.000000e+00 : f32
    %102 = vector.broadcast %cst_102 : f32 to vector<16x128xf32>
    %c0_103 = arith.constant 0 : index
    %c7_104 = arith.constant 7 : index
    %c0_105 = arith.constant 0 : index
    %103 = vector.load %arg15[%c0_103, %c7_104, %c0_105] : memref<1x32x128xbf16, #tpu.memory_space<vmem>>, vector<1x16x128xbf16>
    %104 = vector.shape_cast %103 : vector<1x16x128xbf16> to vector<16x128xbf16>
    %c0_106 = arith.constant 0 : index
    %c0_107 = arith.constant 0 : index
    %c0_108 = arith.constant 0 : index
    %105 = vector.load %arg8[%c0_106, %c0_107, %c0_108] : memref<3x128x128xbf16, #tpu.memory_space<vmem>>, vector<1x128x128xbf16>
    %106 = vector.shape_cast %105 : vector<1x128x128xbf16> to vector<128x128xbf16>
    %cst_109 = arith.constant dense<0.000000e+00> : vector<16x128xf32>
    %107 = tpu.matmul %104, %106, %cst_109 {dimension_numbers = #tpu.dot_dimension_numbers<[1], [0], [0], [1], [0, 0, 1, 1], [], []>} : vector<16x128xbf16>, vector<128x128xbf16>, vector<16x128xf32> -> vector<16x128xf32>
    %108 = arith.addf %102, %107 : vector<16x128xf32>
    %c0_110 = arith.constant 0 : index
    %c8_111 = arith.constant 8 : index
    %c0_112 = arith.constant 0 : index
    %109 = vector.load %arg15[%c0_110, %c8_111, %c0_112] : memref<1x32x128xbf16, #tpu.memory_space<vmem>>, vector<1x16x128xbf16>
    %110 = vector.shape_cast %109 : vector<1x16x128xbf16> to vector<16x128xbf16>
    %c1_113 = arith.constant 1 : index
    %c0_114 = arith.constant 0 : index
    %c0_115 = arith.constant 0 : index
    %111 = vector.load %arg8[%c1_113, %c0_114, %c0_115] : memref<3x128x128xbf16, #tpu.memory_space<vmem>>, vector<1x128x128xbf16>
    %112 = vector.shape_cast %111 : vector<1x128x128xbf16> to vector<128x128xbf16>
    %cst_116 = arith.constant dense<0.000000e+00> : vector<16x128xf32>
    %113 = tpu.matmul %110, %112, %cst_116 {dimension_numbers = #tpu.dot_dimension_numbers<[1], [0], [0], [1], [0, 0, 1, 1], [], []>} : vector<16x128xbf16>, vector<128x128xbf16>, vector<16x128xf32> -> vector<16x128xf32>
    %114 = arith.addf %108, %113 : vector<16x128xf32>
    %c0_117 = arith.constant 0 : index
    %c9_118 = arith.constant 9 : index
    %c0_119 = arith.constant 0 : index
    %115 = vector.load %arg15[%c0_117, %c9_118, %c0_119] : memref<1x32x128xbf16, #tpu.memory_space<vmem>>, vector<1x16x128xbf16>
    %116 = vector.shape_cast %115 : vector<1x16x128xbf16> to vector<16x128xbf16>
    %c2_120 = arith.constant 2 : index
    %c0_121 = arith.constant 0 : index
    %c0_122 = arith.constant 0 : index
    %117 = vector.load %arg8[%c2_120, %c0_121, %c0_122] : memref<3x128x128xbf16, #tpu.memory_space<vmem>>, vector<1x128x128xbf16>
    %118 = vector.shape_cast %117 : vector<1x128x128xbf16> to vector<128x128xbf16>
    %cst_123 = arith.constant dense<0.000000e+00> : vector<16x128xf32>
    %119 = tpu.matmul %116, %118, %cst_123 {dimension_numbers = #tpu.dot_dimension_numbers<[1], [0], [0], [1], [0, 0, 1, 1], [], []>} : vector<16x128xbf16>, vector<128x128xbf16>, vector<16x128xf32> -> vector<16x128xf32>
    %120 = arith.addf %114, %119 : vector<16x128xf32>
    %c0_124 = arith.constant 0 : index
    %c0_125 = arith.constant 0 : index
    %121 = vector.load %arg9[%c0_124, %c0_125] : memref<1x128xf32, #tpu.memory_space<vmem>>, vector<1x128xf32>
    %122 = vector.broadcast %121 : vector<1x128xf32> to vector<16x128xf32>
    %123 = arith.mulf %120, %122 : vector<16x128xf32>
    %c0_126 = arith.constant 0 : index
    %c0_127 = arith.constant 0 : index
    %124 = vector.load %arg10[%c0_126, %c0_127] : memref<1x128xf32, #tpu.memory_space<vmem>>, vector<1x128xf32>
    %125 = vector.broadcast %124 : vector<1x128xf32> to vector<16x128xf32>
    %126 = arith.addf %123, %125 : vector<16x128xf32>
    %c0_128 = arith.constant 0 : index
    %c0_129 = arith.constant 0 : index
    %c0_130 = arith.constant 0 : index
    %127 = vector.load %arg1[%c0_128, %c0_129, %c0_130] : memref<1x16x128xbf16, #tpu.memory_space<vmem>>, vector<1x16x128xbf16>
    %128 = vector.shape_cast %127 : vector<1x16x128xbf16> to vector<16x128xbf16>
    %c0_131 = arith.constant 0 : index
    %c0_132 = arith.constant 0 : index
    %c0_133 = arith.constant 0 : index
    %129 = vector.load %arg11[%c0_131, %c0_132, %c0_133] : memref<1x128x128xbf16, #tpu.memory_space<vmem>>, vector<1x128x128xbf16>
    %130 = vector.shape_cast %129 : vector<1x128x128xbf16> to vector<128x128xbf16>
    %cst_134 = arith.constant dense<0.000000e+00> : vector<16x128xf32>
    %131 = tpu.matmul %128, %130, %cst_134 {dimension_numbers = #tpu.dot_dimension_numbers<[1], [0], [0], [1], [0, 0, 1, 1], [], []>} : vector<16x128xbf16>, vector<128x128xbf16>, vector<16x128xf32> -> vector<16x128xf32>
    %c0_135 = arith.constant 0 : index
    %c0_136 = arith.constant 0 : index
    %132 = vector.load %arg12[%c0_135, %c0_136] : memref<1x128xf32, #tpu.memory_space<vmem>>, vector<1x128xf32>
    %133 = vector.broadcast %132 : vector<1x128xf32> to vector<16x128xf32>
    %134 = arith.mulf %131, %133 : vector<16x128xf32>
    %c0_137 = arith.constant 0 : index
    %c0_138 = arith.constant 0 : index
    %135 = vector.load %arg13[%c0_137, %c0_138] : memref<1x128xf32, #tpu.memory_space<vmem>>, vector<1x128xf32>
    %136 = vector.broadcast %135 : vector<1x128xf32> to vector<16x128xf32>
    %137 = arith.addf %134, %136 : vector<16x128xf32>
    %138 = arith.addf %126, %137 : vector<16x128xf32>
    %cst_139 = arith.constant 0.000000e+00 : f32
    %139 = vector.broadcast %cst_139 : f32 to vector<16x128xf32>
    %140 = arith.maximumf %138, %139 : vector<16x128xf32>
    %141 = arith.truncf %140 : vector<16x128xf32> to vector<16x128xbf16>
    %142 = vector.shape_cast %141 : vector<16x128xbf16> to vector<1x16x128xbf16>
    %c0_140 = arith.constant 0 : index
    %c0_141 = arith.constant 0 : index
    %c0_142 = arith.constant 0 : index
    %143 = vector.load %arg14[%c0_140, %c0_141, %c0_142] : memref<1x16x128xbf16, #tpu.memory_space<vmem>>, vector<1x16x128xbf16>
    tpu.vector_store %arg14[%c0_140, %c0_141, %c0_142], %142 {strides = array<i32>} : memref<1x16x128xbf16, #tpu.memory_space<vmem>>, vector<1x16x128xbf16>,
    return
  }
  func.func @transform_0(%arg0: i32) -> (i32, i32, i32) {
    %c0_i32 = arith.constant 0 : i32
    %c0_i32_0 = arith.constant 0 : i32
    %c0_i32_1 = arith.constant 0 : i32
    return %arg0, %c0_i32, %c0_i32_0 : i32, i32, i32
  }
  func.func @transform_1(%arg0: i32) -> (i32, i32, i32) {
    %c0_i32 = arith.constant 0 : i32
    %c0_i32_0 = arith.constant 0 : i32
    %c0_i32_1 = arith.constant 0 : i32
    %c0_i32_2 = arith.constant 0 : i32
    return %c0_i32, %c0_i32_0, %c0_i32_1 : i32, i32, i32
  }
  func.func @transform_2(%arg0: i32) -> (i32, i32) {
    %c0_i32 = arith.constant 0 : i32
    %c0_i32_0 = arith.constant 0 : i32
    %c0_i32_1 = arith.constant 0 : i32
    return %c0_i32, %c0_i32_0 : i32, i32
  }
  func.func @transform_3(%arg0: i32) -> (i32, i32) {
    %c0_i32 = arith.constant 0 : i32
    %c0_i32_0 = arith.constant 0 : i32
    %c0_i32_1 = arith.constant 0 : i32
    return %c0_i32, %c0_i32_0 : i32, i32
  }
  func.func @transform_4(%arg0: i32) -> (i32, i32, i32) {
    %c0_i32 = arith.constant 0 : i32
    %c0_i32_0 = arith.constant 0 : i32
    %c0_i32_1 = arith.constant 0 : i32
    %c0_i32_2 = arith.constant 0 : i32
    return %c0_i32, %c0_i32_0, %c0_i32_1 : i32, i32, i32
  }
  func.func @transform_5(%arg0: i32) -> (i32, i32) {
    %c0_i32 = arith.constant 0 : i32
    %c0_i32_0 = arith.constant 0 : i32
    %c0_i32_1 = arith.constant 0 : i32
    return %c0_i32, %c0_i32_0 : i32, i32
  }
  func.func @transform_6(%arg0: i32) -> (i32, i32) {
    %c0_i32 = arith.constant 0 : i32
    %c0_i32_0 = arith.constant 0 : i32
    %c0_i32_1 = arith.constant 0 : i32
    return %c0_i32, %c0_i32_0 : i32, i32
  }
  func.func @transform_7(%arg0: i32) -> (i32, i32, i32) {
    %c0_i32 = arith.constant 0 : i32
    %c0_i32_0 = arith.constant 0 : i32
    %c0_i32_1 = arith.constant 0 : i32
    %c0_i32_2 = arith.constant 0 : i32
    return %c0_i32, %c0_i32_0, %c0_i32_1 : i32, i32, i32
  }
  func.func @transform_8(%arg0: i32) -> (i32, i32) {
    %c0_i32 = arith.constant 0 : i32
    %c0_i32_0 = arith.constant 0 : i32
    %c0_i32_1 = arith.constant 0 : i32
    return %c0_i32, %c0_i32_0 : i32, i32
  }
  func.func @transform_9(%arg0: i32) -> (i32, i32) {
    %c0_i32 = arith.constant 0 : i32
    %c0_i32_0 = arith.constant 0 : i32
    %c0_i32_1 = arith.constant 0 : i32
    return %c0_i32, %c0_i32_0 : i32, i32
  }
  func.func @transform_10(%arg0: i32) -> (i32, i32, i32) {
    %c0_i32 = arith.constant 0 : i32
    %c0_i32_0 = arith.constant 0 : i32
    %c0_i32_1 = arith.constant 0 : i32
    %c0_i32_2 = arith.constant 0 : i32
    return %c0_i32, %c0_i32_0, %c0_i32_1 : i32, i32, i32
  }
  func.func @transform_11(%arg0: i32) -> (i32, i32) {
    %c0_i32 = arith.constant 0 : i32
    %c0_i32_0 = arith.constant 0 : i32
    %c0_i32_1 = arith.constant 0 : i32
    return %c0_i32, %c0_i32_0 : i32, i32
  }
  func.func @transform_12(%arg0: i32) -> (i32, i32) {
    %c0_i32 = arith.constant 0 : i32
    %c0_i32_0 = arith.constant 0 : i32
    %c0_i32_1 = arith.constant 0 : i32
    return %c0_i32, %c0_i32_0 : i32, i32
  }
  func.func @transform_13(%arg0: i32) -> (i32, i32, i32) {
    %c0_i32 = arith.constant 0 : i32
    %c0_i32_0 = arith.constant 0 : i32
    %c0_i32_1 = arith.constant 0 : i32
    return %arg0, %c0_i32, %c0_i32_0 : i32, i32, i32
  }
}

</mosaic_0001>

<llo_original>
// kernel: tpu_custom_call.1
$region0: #{tpu_custom_call.1}
  #allocation0 [shape = 'u32[]', space=smem, size = 0x4, offset = 0x4, fixed_abs, tag = 'smem constant byte address 0x4 - core index']
  #allocation1 [shape = 'u32[144,128]{1,0:T(1,128)}', space=vmem, size = 0x12000, scoped, tag = 'internal scratch']
  #allocation2 [shape = 'bf16[1,32,128]{2,1,0:T(8,128)(2,1)}', space=vmem, size = 0x2000, scoped, tag = 'scratch operand']
  %s0 = inlined_call_operand.hbm [shape: bf16[2,16,128], index: 0, kind: input, shape index: {}]
  %s1 = inlined_call_operand.hbm [shape: bf16[7,128,128], index: 1, kind: input, shape index: {}]
  %s2 = inlined_call_operand.vmem [shape: f32[1,128], index: 2, kind: input, shape index: {}]
  %s3 = inlined_call_operand.vmem [shape: f32[1,128], index: 3, kind: input, shape index: {}]
  %s4 = inlined_call_operand.hbm [shape: bf16[5,128,128], index: 4, kind: input, shape index: {}]
  %s5 = inlined_call_operand.vmem [shape: f32[1,128], index: 5, kind: input, shape index: {}]
  %s6 = inlined_call_operand.vmem [shape: f32[1,128], index: 6, kind: input, shape index: {}]
  %s7 = inlined_call_operand.hbm [shape: bf16[3,128,128], index: 7, kind: input, shape index: {}]
  %s8 = inlined_call_operand.vmem [shape: f32[1,128], index: 8, kind: input, shape index: {}]
  %s9 = inlined_call_operand.vmem [shape: f32[1,128], index: 9, kind: input, shape index: {}]
  %s10 = inlined_call_operand.hbm [shape: bf16[1,128,128], index: 10, kind: input, shape index: {}]
  %s11 = inlined_call_operand.vmem [shape: f32[1,128], index: 11, kind: input, shape index: {}]
  %s12 = inlined_call_operand.vmem [shape: f32[1,128], index: 12, kind: input, shape index: {}]
  %s13 = inlined_call_operand.hbm [shape: bf16[2,16,128], index: 13, kind: output, shape index: {}]
  %s14 = sld [smem:[#allocation0]]
  $region105: #{tpu_custom_call.1} parent=0
    _
  %s16 = ssub.s32 1, %s14
  %s17 = scalar_select 0, %s16, %s14
  $region1: #{tpu_custom_call.1} parent=0
    #allocation3 [shape = 'u8[8192]{0}', space=vmem, size = 0x2000, scoped, tag = 'input window, operand 0']
    #allocation4 [shape = 's32[2]{0}', space=sflag, size = 0x8, scoped, tag = 'scoped memory for tpu_custom_call.1']
    #allocation5 [shape = 's32[2]{0}', space=sflag, size = 0x8, scoped, tag = 'scoped memory for tpu_custom_call.1']
    #allocation6 [shape = 'u8[229376]{0}', space=vmem, size = 0x38000, scoped, tag = 'input window, operand 1, single buffered']
    #allocation7 [shape = 's32[1]{0}', space=sflag, size = 0x4, scoped, tag = 'scoped memory for tpu_custom_call.1']
    #allocation8 [shape = 'u8[163840]{0}', space=vmem, size = 0x28000, scoped, tag = 'input window, operand 4, single buffered']
    #allocation9 [shape = 'u8[98304]{0}', space=vmem, size = 0x18000, scoped, tag = 'input window, operand 7, single buffered']
    #allocation10 [shape = 's32[1]{0}', space=sflag, size = 0x4, scoped, tag = 'scoped memory for tpu_custom_call.1']
    #allocation11 [shape = 'u8[32768]{0}', space=vmem, size = 0x8000, scoped, tag = 'input window, operand 10, single buffered']
    #allocation12 [shape = 'u8[8192]{0}', space=vmem, size = 0x2000, scoped, tag = 'output window, operand 0']
    %18 = vsyncpa [#allocation4], 0
    %s19 = scalar_lea.sflag [#allocation4], 1
    %20 = vsyncpa %s19, 0
    %21 = vsyncpa [#allocation7], 0
    %22 = vsyncpa [#allocation10], 0
    %23 = vsyncpa [#allocation5], 0
    %s24 = scalar_lea.sflag [#allocation5], 1
    %25 = vsyncpa %s24, 0
    loop: start=0, step=1, limit=4
    $region2: #{tpu_custom_call.1} parent=1 // loop_pre_header
      _
    $region3: #{tpu_custom_call.1} parent=1 // loop_header
      %s27 = sphi 0, %s31
      %p28 = scmp.ge.s32.totalorder %s27, 4
      %s37 = sphi 0, %s39
      %s40 = sphi 0, %s37
      %s41 = sphi 0, %s40
      %s57 = sphi 0, %s41
      %s61 = sphi 0, %s61
      %s63 = sphi 0, %s61
      %s64 = sphi 0, %s63
      %s78 = sphi 0, %s64
      %s82 = sphi 0, %s82
      %s84 = sphi 0, %s82
      %s85 = sphi 0, %s84
      %s99 = sphi 0, %s85
      %s103 = sphi 0, %s103
      %s105 = sphi 0, %s103
      %s106 = sphi 0, %s105
      %s120 = sphi 0, %s106
      %s124 = sphi 0, %s124
      %s126 = sphi 0, %s124
      %s127 = sphi 0, %s126
      %s141 = sphi 0, %s127
      %s145 = sphi 0, %s145
      %s147 = sphi 0, %s145
      %s148 = sphi 0, %s147
      %s162 = sphi 0, %s148
      %s166 = sphi 0, %s166
      %s168 = sphi 0, %s166
      %s169 = sphi 0, %s168
      %s183 = sphi 0, %s169
      %s187 = sphi 0, %s187
      %s189 = sphi 0, %s187
      %s190 = sphi 0, %s189
      %s204 = sphi 0, %s190
      %s208 = sphi 0, %s208
      %s210 = sphi 0, %s208
      %s211 = sphi 0, %s210
      %s225 = sphi 0, %s211
      %s229 = sphi 0, %s229
      %s231 = sphi 0, %s229
      %s232 = sphi 0, %s231
      %s246 = sphi 0, %s232
      %s250 = sphi 0, %s250
      %s252 = sphi 0, %s250
      %s253 = sphi 0, %s252
      %s267 = sphi 0, %s253
      %s271 = sphi 0, %s271
      %s273 = sphi 0, %s271
      %s274 = sphi 0, %s273
      %s288 = sphi 0, %s274
      %s292 = sphi 0, %s292
      %s294 = sphi 0, %s292
      %s295 = sphi 0, %s294
      %s309 = sphi 0, %s295
      %s315 = sphi 0, %s317
      %s318 = sphi 0, %s315
      %s319 = sphi 0, %s318
      %s335 = sphi 0, %s319
    $region4: #{tpu_custom_call.1} parent=1 // loop_header_branch
      %30 = sbr.rel (%p28) target = $region8
    $region5: #{tpu_custom_call.1} parent=1 // loop_body
      %s32 = ssub.s32 %s27, 1
      %s33 = ssub.s32 %s27, 2
      %s34 = sadd.s32 %s27, 1
      %s35 = ssub.s32 %s27, %s34
      %p36 = scmp.eq.s32.totalorder %s35, 0
      %s38 = sadd.s32 %s37, 1
      %s39 = scalar_select %p36, %s37, %s38
      %p42 = pneg %p36
      %p43 = scmp.eq.s32.totalorder %s27, 1
      %p44 = por %p42, %p43
      %p45 = scmp.ne.s32.totalorder %s37, %s40
      %p46 = scmp.eq.s32.totalorder %s27, 0
      %p47 = por %p45, %p46
      %p48 = scmp.ne.s32.totalorder %s37, %s40
      %p49 = scmp.eq.s32.totalorder %s32, 1
      %p50 = por %p48, %p49
      %p51 = scmp.ne.s32.totalorder %s40, %s41
      %p52 = scmp.eq.s32.totalorder %s32, 0
      %p53 = por %p51, %p52
      %p54 = scmp.ne.s32.totalorder %s40, %s41
      %p55 = scmp.eq.s32.totalorder %s33, 1
      %p56 = por %p54, %p55
      %p58 = scmp.ne.s32.totalorder %s41, %s57
      %p59 = scmp.eq.s32.totalorder %s33, 0
      %p60 = por %p58, %p59
      %s62 = sadd.s32 %s61, 1
      %p65 = scmp.eq.s32.totalorder %s27, 1
      %p66 = scmp.ne.s32.totalorder %s61, %s63
      %p67 = scmp.eq.s32.totalorder %s27, 0
      %p68 = por %p66, %p67
      %p69 = scmp.ne.s32.totalorder %s61, %s63
      %p70 = scmp.eq.s32.totalorder %s32, 1
      %p71 = por %p69, %p70
      %p72 = scmp.ne.s32.totalorder %s63, %s64
      %p73 = scmp.eq.s32.totalorder %s32, 0
      %p74 = por %p72, %p73
      %p75 = scmp.ne.s32.totalorder %s63, %s64
      %p76 = scmp.eq.s32.totalorder %s33, 1
      %p77 = por %p75, %p76
      %p79 = scmp.ne.s32.totalorder %s64, %s78
      %p80 = scmp.eq.s32.totalorder %s33, 0
      %p81 = por %p79, %p80
      %s83 = sadd.s32 %s82, 1
      %p86 = scmp.eq.s32.totalorder %s27, 1
      %p87 = scmp.ne.s32.totalorder %s82, %s84
      %p88 = scmp.eq.s32.totalorder %s27, 0
      %p89 = por %p87, %p88
      %p90 = scmp.ne.s32.totalorder %s82, %s84
      %p91 = scmp.eq.s32.totalorder %s32, 1
      %p92 = por %p90, %p91
      %p93 = scmp.ne.s32.totalorder %s84, %s85
      %p94 = scmp.eq.s32.totalorder %s32, 0
      %p95 = por %p93, %p94
      %p96 = scmp.ne.s32.totalorder %s84, %s85
      %p97 = scmp.eq.s32.totalorder %s33, 1
      %p98 = por %p96, %p97
      %p100 = scmp.ne.s32.totalorder %s85, %s99
      %p101 = scmp.eq.s32.totalorder %s33, 0
      %p102 = por %p100, %p101
      %s104 = sadd.s32 %s103, 1
      %p107 = scmp.eq.s32.totalorder %s27, 1
      %p108 = scmp.ne.s32.totalorder %s103, %s105
      %p109 = scmp.eq.s32.totalorder %s27, 0
      %p110 = por %p108, %p109
      %p111 = scmp.ne.s32.totalorder %s103, %s105
      %p112 = scmp.eq.s32.totalorder %s32, 1
      %p113 = por %p111, %p112
      %p114 = scmp.ne.s32.totalorder %s105, %s106
      %p115 = scmp.eq.s32.totalorder %s32, 0
      %p116 = por %p114, %p115
      %p117 = scmp.ne.s32.totalorder %s105, %s106
      %p118 = scmp.eq.s32.totalorder %s33, 1
      %p119 = por %p117, %p118
      %p121 = scmp.ne.s32.totalorder %s106, %s120
      %p122 = scmp.eq.s32.totalorder %s33, 0
      %p123 = por %p121, %p122
      %s125 = sadd.s32 %s124, 1
      %p128 = scmp.eq.s32.totalorder %s27, 1
      %p129 = scmp.ne.s32.totalorder %s124, %s126
      %p130 = scmp.eq.s32.totalorder %s27, 0
      %p131 = por %p129, %p130
      %p132 = scmp.ne.s32.totalorder %s124, %s126
      %p133 = scmp.eq.s32.totalorder %s32, 1
      %p134 = por %p132, %p133
      %p135 = scmp.ne.s32.totalorder %s126, %s127
      %p136 = scmp.eq.s32.totalorder %s32, 0
      %p137 = por %p135, %p136
      %p138 = scmp.ne.s32.totalorder %s126, %s127
      %p139 = scmp.eq.s32.totalorder %s33, 1
      %p140 = por %p138, %p139
      %p142 = scmp.ne.s32.totalorder %s127, %s141
      %p143 = scmp.eq.s32.totalorder %s33, 0
      %p144 = por %p142, %p143
      %s146 = sadd.s32 %s145, 1
      %p149 = scmp.eq.s32.totalorder %s27, 1
      %p150 = scmp.ne.s32.totalorder %s145, %s147
      %p151 = scmp.eq.s32.totalorder %s27, 0
      %p152 = por %p150, %p151
      %p153 = scmp.ne.s32.totalorder %s145, %s147
      %p154 = scmp.eq.s32.totalorder %s32, 1
      %p155 = por %p153, %p154
      %p156 = scmp.ne.s32.totalorder %s147, %s148
      %p157 = scmp.eq.s32.totalorder %s32, 0
      %p158 = por %p156, %p157
      %p159 = scmp.ne.s32.totalorder %s147, %s148
      %p160 = scmp.eq.s32.totalorder %s33, 1
      %p161 = por %p159, %p160
      %p163 = scmp.ne.s32.totalorder %s148, %s162
      %p164 = scmp.eq.s32.totalorder %s33, 0
      %p165 = por %p163, %p164
      %s167 = sadd.s32 %s166, 1
      %p170 = scmp.eq.s32.totalorder %s27, 1
      %p171 = scmp.ne.s32.totalorder %s166, %s168
      %p172 = scmp.eq.s32.totalorder %s27, 0
      %p173 = por %p171, %p172
      %p174 = scmp.ne.s32.totalorder %s166, %s168
      %p175 = scmp.eq.s32.totalorder %s32, 1
      %p176 = por %p174, %p175
      %p177 = scmp.ne.s32.totalorder %s168, %s169
      %p178 = scmp.eq.s32.totalorder %s32, 0
      %p179 = por %p177, %p178
      %p180 = scmp.ne.s32.totalorder %s168, %s169
      %p181 = scmp.eq.s32.totalorder %s33, 1
      %p182 = por %p180, %p181
      %p184 = scmp.ne.s32.totalorder %s169, %s183
      %p185 = scmp.eq.s32.totalorder %s33, 0
      %p186 = por %p184, %p185
      %s188 = sadd.s32 %s187, 1
      %p191 = scmp.eq.s32.totalorder %s27, 1
      %p192 = scmp.ne.s32.totalorder %s187, %s189
      %p193 = scmp.eq.s32.totalorder %s27, 0
      %p194 = por %p192, %p193
      %p195 = scmp.ne.s32.totalorder %s187, %s189
      %p196 = scmp.eq.s32.totalorder %s32, 1
      %p197 = por %p195, %p196
      %p198 = scmp.ne.s32.totalorder %s189, %s190
      %p199 = scmp.eq.s32.totalorder %s32, 0
      %p200 = por %p198, %p199
      %p201 = scmp.ne.s32.totalorder %s189, %s190
      %p202 = scmp.eq.s32.totalorder %s33, 1
      %p203 = por %p201, %p202
      %p205 = scmp.ne.s32.totalorder %s190, %s204
      %p206 = scmp.eq.s32.totalorder %s33, 0
      %p207 = por %p205, %p206
      %s209 = sadd.s32 %s208, 1
      %p212 = scmp.eq.s32.totalorder %s27, 1
      %p213 = scmp.ne.s32.totalorder %s208, %s210
      %p214 = scmp.eq.s32.totalorder %s27, 0
      %p215 = por %p213, %p214
      %p216 = scmp.ne.s32.totalorder %s208, %s210
      %p217 = scmp.eq.s32.totalorder %s32, 1
      %p218 = por %p216, %p217
      %p219 = scmp.ne.s32.totalorder %s210, %s211
      %p220 = scmp.eq.s32.totalorder %s32, 0
      %p221 = por %p219, %p220
      %p222 = scmp.ne.s32.totalorder %s210, %s211
      %p223 = scmp.eq.s32.totalorder %s33, 1
      %p224 = por %p222, %p223
      %p226 = scmp.ne.s32.totalorder %s211, %s225
      %p227 = scmp.eq.s32.totalorder %s33, 0
      %p228 = por %p226, %p227
      %s230 = sadd.s32 %s229, 1
      %p233 = scmp.eq.s32.totalorder %s27, 1
      %p234 = scmp.ne.s32.totalorder %s229, %s231
      %p235 = scmp.eq.s32.totalorder %s27, 0
      %p236 = por %p234, %p235
      %p237 = scmp.ne.s32.totalorder %s229, %s231
      %p238 = scmp.eq.s32.totalorder %s32, 1
      %p239 = por %p237, %p238
      %p240 = scmp.ne.s32.totalorder %s231, %s232
      %p241 = scmp.eq.s32.totalorder %s32, 0
      %p242 = por %p240, %p241
      %p243 = scmp.ne.s32.totalorder %s231, %s232
      %p244 = scmp.eq.s32.totalorder %s33, 1
      %p245 = por %p243, %p244
      %p247 = scmp.ne.s32.totalorder %s232, %s246
      %p248 = scmp.eq.s32.totalorder %s33, 0
      %p249 = por %p247, %p248
      %s251 = sadd.s32 %s250, 1
      %p254 = scmp.eq.s32.totalorder %s27, 1
      %p255 = scmp.ne.s32.totalorder %s250, %s252
      %p256 = scmp.eq.s32.totalorder %s27, 0
      %p257 = por %p255, %p256
      %p258 = scmp.ne.s32.totalorder %s250, %s252
      %p259 = scmp.eq.s32.totalorder %s32, 1
      %p260 = por %p258, %p259
      %p261 = scmp.ne.s32.totalorder %s252, %s253
      %p262 = scmp.eq.s32.totalorder %s32, 0
      %p263 = por %p261, %p262
      %p264 = scmp.ne.s32.totalorder %s252, %s253
      %p265 = scmp.eq.s32.totalorder %s33, 1
      %p266 = por %p264, %p265
      %p268 = scmp.ne.s32.totalorder %s253, %s267
      %p269 = scmp.eq.s32.totalorder %s33, 0
      %p270 = por %p268, %p269
      %s272 = sadd.s32 %s271, 1
      %p275 = scmp.eq.s32.totalorder %s27, 1
      %p276 = scmp.ne.s32.totalorder %s271, %s273
      %p277 = scmp.eq.s32.totalorder %s27, 0
      %p278 = por %p276, %p277
      %p279 = scmp.ne.s32.totalorder %s271, %s273
      %p280 = scmp.eq.s32.totalorder %s32, 1
      %p281 = por %p279, %p280
      %p282 = scmp.ne.s32.totalorder %s273, %s274
      %p283 = scmp.eq.s32.totalorder %s32, 0
      %p284 = por %p282, %p283
      %p285 = scmp.ne.s32.totalorder %s273, %s274
      %p286 = scmp.eq.s32.totalorder %s33, 1
      %p287 = por %p285, %p286
      %p289 = scmp.ne.s32.totalorder %s274, %s288
      %p290 = scmp.eq.s32.totalorder %s33, 0
      %p291 = por %p289, %p290
      %s293 = sadd.s32 %s292, 1
      %p296 = scmp.eq.s32.totalorder %s27, 1
      %p297 = scmp.ne.s32.totalorder %s292, %s294
      %p298 = scmp.eq.s32.totalorder %s27, 0
      %p299 = por %p297, %p298
      %p300 = scmp.ne.s32.totalorder %s292, %s294
      %p301 = scmp.eq.s32.totalorder %s32, 1
      %p302 = por %p300, %p301
      %p303 = scmp.ne.s32.totalorder %s294, %s295
      %p304 = scmp.eq.s32.totalorder %s32, 0
      %p305 = por %p303, %p304
      %p306 = scmp.ne.s32.totalorder %s294, %s295
      %p307 = scmp.eq.s32.totalorder %s33, 1
      %p308 = por %p306, %p307
      %p310 = scmp.ne.s32.totalorder %s295, %s309
      %p311 = scmp.eq.s32.totalorder %s33, 0
      %p312 = por %p310, %p311
      %s313 = ssub.s32 %s27, %s34
      %p314 = scmp.eq.s32.totalorder %s313, 0
      %s316 = sadd.s32 %s315, 1
      %s317 = scalar_select %p314, %s315, %s316
      %p320 = pneg %p314
      %p321 = scmp.eq.s32.totalorder %s27, 1
      %p322 = por %p320, %p321
      %p323 = scmp.ne.s32.totalorder %s315, %s318
      %p324 = scmp.eq.s32.totalorder %s27, 0
      %p325 = por %p323, %p324
      %p326 = scmp.ne.s32.totalorder %s315, %s318
      %p327 = scmp.eq.s32.totalorder %s32, 1
      %p328 = por %p326, %p327
      %p329 = scmp.ne.s32.totalorder %s318, %s319
      %p330 = scmp.eq.s32.totalorder %s32, 0
      %p331 = por %p329, %p330
      %p332 = scmp.ne.s32.totalorder %s318, %s319
      %p333 = scmp.eq.s32.totalorder %s33, 1
      %p334 = por %p332, %p333
      %p336 = scmp.ne.s32.totalorder %s319, %s335
      %p337 = scmp.eq.s32.totalorder %s33, 0
      %p338 = por %p336, %p337
      %p339 = scmp.le.s32.totalorder 1, %s27
      %p340 = scmp.lt.s32.totalorder %s27, 3
      %p341 = pnand %p339, %p340
      %p342 = pneg %p341
      // Predicated region
      $region9: #{tpu_custom_call.1} parent=5 // pred_check
        _
      $region10: #{tpu_custom_call.1} parent=5 // pred_check_branch
        %344 = sbr.rel (%p341) target = $region12
      $region11: #{tpu_custom_call.1} parent=5 // pred_region
        %s345 = ssub.s32 %s27, 1
        // Predicated region
        $region13: #{tpu_custom_call.1} parent=11 // pred_check
          %p346 = pneg %p74
        $region14: #{tpu_custom_call.1} parent=11 // pred_check_branch
          %348 = sbr.rel (%p346) target = $region16
        $region15: #{tpu_custom_call.1} parent=11 // pred_region
          %s350 = ssub.s32 7168, 7168
          %351 = vsyncadd [#allocation7], %s350
          %s352 = sshll.u32 [#allocation6], 4
          %s353 = int_to_ptr.vmem [resolvable:$true] %s352
          %358 = dma.hbm_to_vmem [thread:$0]  %s1, 7168, %s353, [#allocation7], 64, 64, 4
        $region16: #{tpu_custom_call.1} parent=11 // pred_fallthru
          _
        // Predicated region
        $region17: #{tpu_custom_call.1} parent=11 // pred_check
          %p359 = pneg %p95
        $region18: #{tpu_custom_call.1} parent=11 // pred_check_branch
          %361 = sbr.rel (%p359) target = $region20
        $region19: #{tpu_custom_call.1} parent=11 // pred_region
          _
        $region20: #{tpu_custom_call.1} parent=11 // pred_fallthru
          _
        // Predicated region
        $region21: #{tpu_custom_call.1} parent=11 // pred_check
          %p362 = pneg %p116
        $region22: #{tpu_custom_call.1} parent=11 // pred_check_branch
          %364 = sbr.rel (%p362) target = $region24
        $region23: #{tpu_custom_call.1} parent=11 // pred_region
          _
        $region24: #{tpu_custom_call.1} parent=11 // pred_fallthru
          _
        // Predicated region
        $region25: #{tpu_custom_call.1} parent=11 // pred_check
          %p365 = pneg %p137
        $region26: #{tpu_custom_call.1} parent=11 // pred_check_branch
          %367 = sbr.rel (%p365) target = $region28
        $region27: #{tpu_custom_call.1} parent=11 // pred_region
          %s369 = ssub.s32 5120, 5120
          %370 = vsyncadd [#allocation7], %s369
          %s371 = sshll.u32 [#allocation8], 4
          %s372 = int_to_ptr.vmem [resolvable:$true] %s371
          %377 = dma.hbm_to_vmem [thread:$0]  %s4, 5120, %s372, [#allocation7], 64, 64, 4
        $region28: #{tpu_custom_call.1} parent=11 // pred_fallthru
          _
        // Predicated region
        $region29: #{tpu_custom_call.1} parent=11 // pred_check
          %p378 = pneg %p158
        $region30: #{tpu_custom_call.1} parent=11 // pred_check_branch
          %380 = sbr.rel (%p378) target = $region32
        $region31: #{tpu_custom_call.1} parent=11 // pred_region
          _
        $region32: #{tpu_custom_call.1} parent=11 // pred_fallthru
          _
        // Predicated region
        $region33: #{tpu_custom_call.1} parent=11 // pred_check
          %p381 = pneg %p179
        $region34: #{tpu_custom_call.1} parent=11 // pred_check_branch
          %383 = sbr.rel (%p381) target = $region36
        $region35: #{tpu_custom_call.1} parent=11 // pred_region
          _
        $region36: #{tpu_custom_call.1} parent=11 // pred_fallthru
          _
        // Predicated region
        $region37: #{tpu_custom_call.1} parent=11 // pred_check
          %p384 = pneg %p200
        $region38: #{tpu_custom_call.1} parent=11 // pred_check_branch
          %386 = sbr.rel (%p384) target = $region40
        $region39: #{tpu_custom_call.1} parent=11 // pred_region
          %s388 = ssub.s32 3072, 3072
          %389 = vsyncadd [#allocation10], %s388
          %s390 = sshll.u32 [#allocation9], 4
          %s391 = int_to_ptr.vmem [resolvable:$true] %s390
          %396 = dma.hbm_to_vmem [thread:$0]  %s7, 3072, %s391, [#allocation10], 64, 64, 4
        $region40: #{tpu_custom_call.1} parent=11 // pred_fallthru
          _
        // Predicated region
        $region41: #{tpu_custom_call.1} parent=11 // pred_check
          %p397 = pneg %p221
        $region42: #{tpu_custom_call.1} parent=11 // pred_check_branch
          %399 = sbr.rel (%p397) target = $region44
        $region43: #{tpu_custom_call.1} parent=11 // pred_region
          _
        $region44: #{tpu_custom_call.1} parent=11 // pred_fallthru
          _
        // Predicated region
        $region45: #{tpu_custom_call.1} parent=11 // pred_check
          %p400 = pneg %p242
        $region46: #{tpu_custom_call.1} parent=11 // pred_check_branch
          %402 = sbr.rel (%p400) target = $region48
        $region47: #{tpu_custom_call.1} parent=11 // pred_region
          _
        $region48: #{tpu_custom_call.1} parent=11 // pred_fallthru
          _
        // Predicated region
        $region49: #{tpu_custom_call.1} parent=11 // pred_check
          %p403 = pneg %p263
        $region50: #{tpu_custom_call.1} parent=11 // pred_check_branch
          %405 = sbr.rel (%p403) target = $region52
        $region51: #{tpu_custom_call.1} parent=11 // pred_region
          %s407 = ssub.s32 1024, 1024
          %408 = vsyncadd [#allocation10], %s407
          %s409 = sshll.u32 [#allocation11], 4
          %s410 = int_to_ptr.vmem [resolvable:$true] %s409
          %415 = dma.hbm_to_vmem [thread:$0]  %s10, 1024, %s410, [#allocation10], 64, 64, 4
        $region52: #{tpu_custom_call.1} parent=11 // pred_fallthru
          _
        // Predicated region
        $region53: #{tpu_custom_call.1} parent=11 // pred_check
          %p416 = pneg %p284
        $region54: #{tpu_custom_call.1} parent=11 // pred_check_branch
          %418 = sbr.rel (%p416) target = $region56
        $region55: #{tpu_custom_call.1} parent=11 // pred_region
          _
        $region56: #{tpu_custom_call.1} parent=11 // pred_fallthru
          _
        // Predicated region
        $region57: #{tpu_custom_call.1} parent=11 // pred_check
          %p419 = pneg %p305
        $region58: #{tpu_custom_call.1} parent=11 // pred_check_branch
          %421 = sbr.rel (%p419) target = $region60
        $region59: #{tpu_custom_call.1} parent=11 // pred_region
          _
        $region60: #{tpu_custom_call.1} parent=11 // pred_fallthru
          _
      $region12: #{tpu_custom_call.1} parent=5 // pred_fallthru
        _
      %p422 = scmp.lt.s32.totalorder %s27, 2
      // Predicated region
      $region61: #{tpu_custom_call.1} parent=5 // pred_check
        %p423 = pneg %p422
      $region62: #{tpu_custom_call.1} parent=5 // pred_check_branch
        %425 = sbr.rel (%p423) target = $region64
      $region63: #{tpu_custom_call.1} parent=5 // pred_region
        // Predicated region
        $region65: #{tpu_custom_call.1} parent=63 // pred_check
          %p426 = pneg %p47
        $region66: #{tpu_custom_call.1} parent=63 // pred_check_branch
          %428 = sbr.rel (%p426) target = $region68
        $region67: #{tpu_custom_call.1} parent=63 // pred_region
          %s429 = sand.u32 %s37, 1
          %s430 = scalar_lea.sflag [#allocation4], %s429
          %s431 = sand.u32 %s37, 1
          %s432 = smul.addr %s431, 8
          %s433 = scalar_lea.vmem [#allocation3], %s432
          %s435 = ssub.s32 128, 128
          %436 = vsyncadd %s430, %s435
          %s437 = smul.addr %s27, 2
          %s438 = smul.addr %s437, 64
          %s439 = scalar_lea.hbm %s0, %s438
          %s440 = sshll.u32 %s433, 4
          %s441 = int_to_ptr.vmem [resolvable:$true] %s440
          %446 = dma.hbm_to_vmem [thread:$0]  %s439, 128, %s441, %s430, 64, 64, 4
        $region68: #{tpu_custom_call.1} parent=63 // pred_fallthru
          _
      $region64: #{tpu_custom_call.1} parent=5 // pred_fallthru
        _
      %p447 = scmp.le.s32.totalorder 1, %s27
      %p448 = scmp.lt.s32.totalorder %s27, 3
      %p449 = pnand %p447, %p448
      %p450 = pneg %p449
      // Predicated region
      $region69: #{tpu_custom_call.1} parent=5 // pred_check
        _
      $region70: #{tpu_custom_call.1} parent=5 // pred_check_branch
        %452 = sbr.rel (%p449) target = $region72
      $region71: #{tpu_custom_call.1} parent=5 // pred_region
        %s453 = ssub.s32 %s27, 1
        %s454 = sand.u32 %s40, 1
        %s455 = scalar_lea.sflag [#allocation4], %s454
        %s456 = sand.u32 %s40, 1
        %s457 = smul.addr %s456, 8
        %s458 = scalar_lea.vmem [#allocation3], %s457
        // Predicated region
        $region73: #{tpu_custom_call.1} parent=71 // pred_check
          %p459 = pneg %p53
        $region74: #{tpu_custom_call.1} parent=71 // pred_check_branch
          %461 = sbr.rel (%p459) target = $region76
        $region75: #{tpu_custom_call.1} parent=71 // pred_region
          %462 = dma.done %s455, 128
        $region76: #{tpu_custom_call.1} parent=71 // pred_fallthru
          _
        // Predicated region
        $region77: #{tpu_custom_call.1} parent=71 // pred_check
          %p463 = pneg %p74
        $region78: #{tpu_custom_call.1} parent=71 // pred_check_branch
          %465 = sbr.rel (%p463) target = $region80
        $region79: #{tpu_custom_call.1} parent=71 // pred_region
          %466 = dma.done [#allocation7], 7168
        $region80: #{tpu_custom_call.1} parent=71 // pred_fallthru
          _
        // Predicated region
        $region81: #{tpu_custom_call.1} parent=71 // pred_check
          %p467 = pneg %p137
        $region82: #{tpu_custom_call.1} parent=71 // pred_check_branch
          %469 = sbr.rel (%p467) target = $region84
        $region83: #{tpu_custom_call.1} parent=71 // pred_region
          %470 = dma.done [#allocation7], 5120
        $region84: #{tpu_custom_call.1} parent=71 // pred_fallthru
          _
        // Predicated region
        $region85: #{tpu_custom_call.1} parent=71 // pred_check
          %p471 = pneg %p200
        $region86: #{tpu_custom_call.1} parent=71 // pred_check_branch
          %473 = sbr.rel (%p471) target = $region88
        $region87: #{tpu_custom_call.1} parent=71 // pred_region
          %474 = dma.done [#allocation10], 3072
        $region88: #{tpu_custom_call.1} parent=71 // pred_fallthru
          _
        // Predicated region
        $region89: #{tpu_custom_call.1} parent=71 // pred_check
          %p475 = pneg %p263
        $region90: #{tpu_custom_call.1} parent=71 // pred_check_branch
          %477 = sbr.rel (%p475) target = $region92
        $region91: #{tpu_custom_call.1} parent=71 // pred_region
          %478 = dma.done [#allocation10], 1024
        $region92: #{tpu_custom_call.1} parent=71 // pred_fallthru
          _
        %s479 = sand.u32 %s40, 1
        %s480 = scalar_lea.sflag [#allocation4], %s479
        %s481 = sand.u32 %s40, 1
        %s482 = smul.addr %s481, 8
        %s483 = scalar_lea.vmem [#allocation3], %s482
        %p484 = pneg %p53
        %p485 = pneg %p50
        %p486 = pneg %p74
        %p487 = pneg %p71
        %p488 = pneg %p95
        %p489 = pneg %p92
        %p490 = pneg %p116
        %p491 = pneg %p113
        %p492 = pneg %p137
        %p493 = pneg %p134
        %p494 = pneg %p158
        %p495 = pneg %p155
        %p496 = pneg %p179
        %p497 = pneg %p176
        %p498 = pneg %p200
        %p499 = pneg %p197
        %p500 = pneg %p221
        %p501 = pneg %p218
        %p502 = pneg %p242
        %p503 = pneg %p239
        %p504 = pneg %p263
        %p505 = pneg %p260
        %p506 = pneg %p284
        %p507 = pneg %p281
        %p508 = pneg %p305
        %p509 = pneg %p302
        %p510 = pneg %p331
        %p511 = pneg %p328
        %s512 = sand.u32 %s318, 1
        %s513 = scalar_lea.sflag [#allocation5], %s512
        %s514 = sand.u32 %s318, 1
        %s515 = smul.addr %s514, 8
        %s516 = scalar_lea.vmem [#allocation12], %s515
        %518 = vst [vmem:[#allocation2] sm:$0xf] 0
        %519 = vst [vmem:[#allocation2 + $0xc] sm:$0xf] 0
        %v520 = vld [vmem:[%s458] sm:$0xf]
        %v521 = vld [vmem:[%s458 + $0x4] sm:$0xf]
        %522 = vst [vmem:[#allocation2 + $0x4] sm:$0xf] %v520
        %523 = vst [vmem:[#allocation2 + $0x8] sm:$0xf] %v521
        %v524 = vld [vmem:[#allocation2] sm:$0xc]
        %v525 = vld [vmem:[#allocation2 + $0x4] sm:$0xf]
        %v526 = vld [vmem:[#allocation2 + $0x8] sm:$0x7]
        %v527 = vld [vmem:[#allocation6] sm:$0xf]
        %v528 = vld [vmem:[#allocation6 + $0x4] sm:$0xf]
        %v529 = vld [vmem:[#allocation6 + $0x8] sm:$0xf]
        %v530 = vld [vmem:[#allocation6 + $0xc] sm:$0xf]
        %v531 = vld [vmem:[#allocation6 + $0x10] sm:$0xf]
        %v532 = vld [vmem:[#allocation6 + $0x14] sm:$0xf]
        %v533 = vld [vmem:[#allocation6 + $0x18] sm:$0xf]
        %v534 = vld [vmem:[#allocation6 + $0x1c] sm:$0xf]
        %v535 = vld [vmem:[#allocation6 + $0x20] sm:$0xf]
        %v536 = vld [vmem:[#allocation6 + $0x24] sm:$0xf]
        %v537 = vld [vmem:[#allocation6 + $0x28] sm:$0xf]
        %v538 = vld [vmem:[#allocation6 + $0x2c] sm:$0xf]
        %v539 = vld [vmem:[#allocation6 + $0x30] sm:$0xf]
        %v540 = vld [vmem:[#allocation6 + $0x34] sm:$0xf]
        %v541 = vld [vmem:[#allocation6 + $0x38] sm:$0xf]
        %v542 = vld [vmem:[#allocation6 + $0x3c] sm:$0xf]
        %v543 = vld [vmem:[#allocation2] sm:$0x8]
        %s544 = scalar_lea.vmem [#allocation6], 64
        %v545 = vld [vmem:[%s544] sm:$0xf]
        %v546 = vld [vmem:[%s544 + $0x4] sm:$0xf]
        %v547 = vld [vmem:[%s544 + $0x8] sm:$0xf]
        %v548 = vld [vmem:[%s544 + $0xc] sm:$0xf]
        %v549 = vld [vmem:[%s544 + $0x10] sm:$0xf]
        %v550 = vld [vmem:[%s544 + $0x14] sm:$0xf]
        %v551 = vld [vmem:[%s544 + $0x18] sm:$0xf]
        %v552 = vld [vmem:[%s544 + $0x1c] sm:$0xf]
        %v553 = vld [vmem:[%s544 + $0x20] sm:$0xf]
        %v554 = vld [vmem:[%s544 + $0x24] sm:$0xf]
        %v555 = vld [vmem:[%s544 + $0x28] sm:$0xf]
        %v556 = vld [vmem:[%s544 + $0x2c] sm:$0xf]
        %v557 = vld [vmem:[%s544 + $0x30] sm:$0xf]
        %v558 = vld [vmem:[%s544 + $0x34] sm:$0xf]
        %v559 = vld [vmem:[%s544 + $0x38] sm:$0xf]
        %v560 = vld [vmem:[%s544 + $0x3c] sm:$0xf]
        %v564 = vunpack.c.l.b16 %v543
        %v565 = vunpack.c.l.b16 %v525
        %v566 = vunpack.c.l.b16 %v526
        %v567 = vpack.c.b16 %v565, %v564
        %v568 = vpack.c.b16 %v566, %v566
        %vm569 = vcmask 1044480
        %v570 = vrot.slane %v567, 3
        %v571 = vrot.slane %v568, 3
        %v572 = vsel %vm569, %v570, %v571
        %v590 = vunpack.c.l.b16 %v545
        %v591 = vunpack.c.l.b16 %v546
        %v592 = vunpack.c.l.b16 %v547
        %v593 = vunpack.c.l.b16 %v548
        %v594 = vunpack.c.l.b16 %v549
        %v595 = vunpack.c.l.b16 %v550
        %v596 = vunpack.c.l.b16 %v551
        %v597 = vunpack.c.l.b16 %v552
        %v598 = vunpack.c.l.b16 %v553
        %v599 = vunpack.c.l.b16 %v554
        %v600 = vunpack.c.l.b16 %v555
        %v601 = vunpack.c.l.b16 %v556
        %v602 = vunpack.c.l.b16 %v557
        %v603 = vunpack.c.l.b16 %v558
        %v604 = vunpack.c.l.b16 %v559
        %v605 = vunpack.c.l.b16 %v560
        %v606 = vpack.c.b16 %v591, %v590
        %v607 = vpack.c.b16 %v593, %v592
        %v608 = vpack.c.b16 %v595, %v594
        %v609 = vpack.c.b16 %v597, %v596
        %v610 = vpack.c.b16 %v599, %v598
        %v611 = vpack.c.b16 %v601, %v600
        %v612 = vpack.c.b16 %v603, %v602
        %v613 = vpack.c.b16 %v605, %v604
        %622 = vmatprep.subr.bf16.mxu0 0
        %623 = vmatpush1.bf16.msra.mxu0 %v613
        %624 = vmatprep.subr.bf16.mxu0 0
        %625 = vmatpush1.bf16.msra.mxu0 %v612
        %626 = vmatprep.subr.bf16.mxu0 0
        %627 = vmatpush1.bf16.msra.mxu0 %v611
        %628 = vmatprep.subr.bf16.mxu0 0
        %629 = vmatpush1.bf16.msra.mxu0 %v610
        %630 = vmatprep.subr.bf16.mxu0 0
        %631 = vmatpush1.bf16.msra.mxu0 %v609
        %632 = vmatprep.subr.bf16.mxu0 0
        %633 = vmatpush1.bf16.msra.mxu0 %v608
        %634 = vmatprep.subr.bf16.mxu0 0
        %635 = vmatpush1.bf16.msra.mxu0 %v607
        %636 = vmatprep.subr.bf16.mxu0 0
        %637 = vmatpush1.bf16.msra.mxu0 %v606
        %638 = vmatprep.subr.bf16.mxu0 0
        %639 = vmatpush2.bf16.msra.mxu0 0
        %640 = vmatprep.subr.bf16.mxu0 0
        %641 = vmatpush2.bf16.msra.mxu0 0
        %642 = vmatprep.subr.bf16.mxu0 0
        %643 = vmatpush2.bf16.msra.mxu0 0
        %644 = vmatprep.subr.bf16.mxu0 0
        %645 = vmatpush2.bf16.msra.mxu0 0
        %646 = vmatprep.subr.bf16.mxu0 0
        %647 = vmatpush2.bf16.msra.mxu0 0
        %648 = vmatprep.subr.bf16.mxu0 0
        %649 = vmatpush2.bf16.msra.mxu0 0
        %650 = vmatprep.subr.bf16.mxu0 0
        %651 = vmatpush2.bf16.msra.mxu0 0
        %652 = vmatprep.subr.bf16.mxu0 0
        %653 = vmatpush2.bf16.msra.mxu0 0
        %654 = vmatprep.mubr.bf16.mxu0 0
        %655 = vmatmul.mubr.bf16.gmra.mxu0 %v572
        %v656 = vpop.f32.mrf.mxu0
        %v657 = vadd.f32 0.0, %v656
        %v658 = vpop.f32.mrf.mxu0
        %v659 = vpop.f32.mrf.mxu0
        %v660 = vadd.f32 0.0, %v659
        %v661 = vpop.f32.mrf.mxu0
        %662 = vdwg.mxu0
        %v664 = vunpack.c.l.b16 %v524
        %v665 = vpack.c.b16 %v565, %v664
        %vm666 = vsmask.f32 5376
        %v668 = vshrl.u32 %v665, 16
        %v670 = vrot.slane %v668, 2
        %v671 = vshll.u32 %v665, 16
        %v673 = vrot.slane %v671, 3
        %v674 = vor.u32 %v670, %v673
        %v676 = vshrl.u32 %v568, 16
        %v678 = vrot.slane %v676, 2
        %v679 = vshll.u32 %v568, 16
        %v681 = vrot.slane %v679, 3
        %v682 = vor.u32 %v678, %v681
        %v683 = vsel %vm666, %v674, %v682
        %v701 = vunpack.c.l.b16 %v527
        %v702 = vunpack.c.l.b16 %v528
        %v703 = vunpack.c.l.b16 %v529
        %v704 = vunpack.c.l.b16 %v530
        %v705 = vunpack.c.l.b16 %v531
        %v706 = vunpack.c.l.b16 %v532
        %v707 = vunpack.c.l.b16 %v533
        %v708 = vunpack.c.l.b16 %v534
        %v709 = vunpack.c.l.b16 %v535
        %v710 = vunpack.c.l.b16 %v536
        %v711 = vunpack.c.l.b16 %v537
        %v712 = vunpack.c.l.b16 %v538
        %v713 = vunpack.c.l.b16 %v539
        %v714 = vunpack.c.l.b16 %v540
        %v715 = vunpack.c.l.b16 %v541
        %v716 = vunpack.c.l.b16 %v542
        %v717 = vpack.c.b16 %v702, %v701
        %v718 = vpack.c.b16 %v704, %v703
        %v719 = vpack.c.b16 %v706, %v705
        %v720 = vpack.c.b16 %v708, %v707
        %v721 = vpack.c.b16 %v710, %v709
        %v722 = vpack.c.b16 %v712, %v711
        %v723 = vpack.c.b16 %v714, %v713
        %v724 = vpack.c.b16 %v716, %v715
        %733 = vmatprep.subr.bf16.mxu0 0
        %734 = vmatpush1.bf16.msra.mxu0 %v724
        %735 = vmatprep.subr.bf16.mxu0 0
        %736 = vmatpush1.bf16.msra.mxu0 %v723
        %737 = vmatprep.subr.bf16.mxu0 0
        %738 = vmatpush1.bf16.msra.mxu0 %v722
        %739 = vmatprep.subr.bf16.mxu0 0
        %740 = vmatpush1.bf16.msra.mxu0 %v721
        %741 = vmatprep.subr.bf16.mxu0 0
        %742 = vmatpush1.bf16.msra.mxu0 %v720
        %743 = vmatprep.subr.bf16.mxu0 0
        %744 = vmatpush1.bf16.msra.mxu0 %v719
        %745 = vmatprep.subr.bf16.mxu0 0
        %746 = vmatpush1.bf16.msra.mxu0 %v718
        %747 = vmatprep.subr.bf16.mxu0 0
        %748 = vmatpush1.bf16.msra.mxu0 %v717
        %749 = vmatprep.subr.bf16.mxu0 0
        %750 = vmatpush2.bf16.msra.mxu0 0
        %751 = vmatprep.subr.bf16.mxu0 0
        %752 = vmatpush2.bf16.msra.mxu0 0
        %753 = vmatprep.subr.bf16.mxu0 0
        %754 = vmatpush2.bf16.msra.mxu0 0
        %755 = vmatprep.subr.bf16.mxu0 0
        %756 = vmatpush2.bf16.msra.mxu0 0
        %757 = vmatprep.subr.bf16.mxu0 0
        %758 = vmatpush2.bf16.msra.mxu0 0
        %759 = vmatprep.subr.bf16.mxu0 0
        %760 = vmatpush2.bf16.msra.mxu0 0
        %761 = vmatprep.subr.bf16.mxu0 0
        %762 = vmatpush2.bf16.msra.mxu0 0
        %763 = vmatprep.subr.bf16.mxu0 0
        %764 = vmatpush2.bf16.msra.mxu0 0
        %765 = vmatprep.mubr.bf16.mxu0 0
        %766 = vmatmul.mubr.bf16.gmra.mxu0 %v683
        %v767 = vpop.f32.mrf.mxu0
        %v768 = vadd.f32 %v657, %v767
        %v769 = vpop.f32.mrf.mxu0
        %v770 = vpop.f32.mrf.mxu0
        %v771 = vadd.f32 %v660, %v770
        %v772 = vpop.f32.mrf.mxu0
        %773 = vdwg.mxu0
        %v774 = vld [vmem:[#allocation2 + $0x8] sm:$0xf]
        %s775 = scalar_lea.vmem [#allocation6], 128
        %v776 = vld [vmem:[%s775] sm:$0xf]
        %v777 = vld [vmem:[%s775 + $0x4] sm:$0xf]
        %v778 = vld [vmem:[%s775 + $0x8] sm:$0xf]
        %v779 = vld [vmem:[%s775 + $0xc] sm:$0xf]
        %v780 = vld [vmem:[%s775 + $0x10] sm:$0xf]
        %v781 = vld [vmem:[%s775 + $0x14] sm:$0xf]
        %v782 = vld [vmem:[%s775 + $0x18] sm:$0xf]
        %v783 = vld [vmem:[%s775 + $0x1c] sm:$0xf]
        %v784 = vld [vmem:[%s775 + $0x20] sm:$0xf]
        %v785 = vld [vmem:[%s775 + $0x24] sm:$0xf]
        %v786 = vld [vmem:[%s775 + $0x28] sm:$0xf]
        %v787 = vld [vmem:[%s775 + $0x2c] sm:$0xf]
        %v788 = vld [vmem:[%s775 + $0x30] sm:$0xf]
        %v789 = vld [vmem:[%s775 + $0x34] sm:$0xf]
        %v790 = vld [vmem:[%s775 + $0x38] sm:$0xf]
        %v791 = vld [vmem:[%s775 + $0x3c] sm:$0xf]
        %v793 = vunpack.c.l.b16 %v774
        %v794 = vpack.c.b16 %v793, %v793
        %vm795 = vsmask.f32 4352
        %v797 = vshrl.u32 %v567, 16
        %v799 = vrot.slane %v797, 3
        %v800 = vshll.u32 %v567, 16
        %v802 = vrot.slane %v800, 4
        %v803 = vor.u32 %v799, %v802
        %v805 = vshrl.u32 %v794, 16
        %v807 = vrot.slane %v805, 3
        %v808 = vshll.u32 %v794, 16
        %v810 = vrot.slane %v808, 4
        %v811 = vor.u32 %v807, %v810
        %v812 = vsel %vm795, %v803, %v811
        %v830 = vunpack.c.l.b16 %v776
        %v831 = vunpack.c.l.b16 %v777
        %v832 = vunpack.c.l.b16 %v778
        %v833 = vunpack.c.l.b16 %v779
        %v834 = vunpack.c.l.b16 %v780
        %v835 = vunpack.c.l.b16 %v781
        %v836 = vunpack.c.l.b16 %v782
        %v837 = vunpack.c.l.b16 %v783
        %v838 = vunpack.c.l.b16 %v784
        %v839 = vunpack.c.l.b16 %v785
        %v840 = vunpack.c.l.b16 %v786
        %v841 = vunpack.c.l.b16 %v787
        %v842 = vunpack.c.l.b16 %v788
        %v843 = vunpack.c.l.b16 %v789
        %v844 = vunpack.c.l.b16 %v790
        %v845 = vunpack.c.l.b16 %v791
        %v846 = vpack.c.b16 %v831, %v830
        %v847 = vpack.c.b16 %v833, %v832
        %v848 = vpack.c.b16 %v835, %v834
        %v849 = vpack.c.b16 %v837, %v836
        %v850 = vpack.c.b16 %v839, %v838
        %v851 = vpack.c.b16 %v841, %v840
        %v852 = vpack.c.b16 %v843, %v842
        %v853 = vpack.c.b16 %v845, %v844
        %862 = vmatprep.subr.bf16.mxu0 0
        %863 = vmatpush1.bf16.msra.mxu0 %v853
        %864 = vmatprep.subr.bf16.mxu0 0
        %865 = vmatpush1.bf16.msra.mxu0 %v852
        %866 = vmatprep.subr.bf16.mxu0 0
        %867 = vmatpush1.bf16.msra.mxu0 %v851
        %868 = vmatprep.subr.bf16.mxu0 0
        %869 = vmatpush1.bf16.msra.mxu0 %v850
        %870 = vmatprep.subr.bf16.mxu0 0
        %871 = vmatpush1.bf16.msra.mxu0 %v849
        %872 = vmatprep.subr.bf16.mxu0 0
        %873 = vmatpush1.bf16.msra.mxu0 %v848
        %874 = vmatprep.subr.bf16.mxu0 0
        %875 = vmatpush1.bf16.msra.mxu0 %v847
        %876 = vmatprep.subr.bf16.mxu0 0
        %877 = vmatpush1.bf16.msra.mxu0 %v846
        %878 = vmatprep.subr.bf16.mxu0 0
        %879 = vmatpush2.bf16.msra.mxu0 0
        %880 = vmatprep.subr.bf16.mxu0 0
        %881 = vmatpush2.bf16.msra.mxu0 0
        %882 = vmatprep.subr.bf16.mxu0 0
        %883 = vmatpush2.bf16.msra.mxu0 0
        %884 = vmatprep.subr.bf16.mxu0 0
        %885 = vmatpush2.bf16.msra.mxu0 0
        %886 = vmatprep.subr.bf16.mxu0 0
        %887 = vmatpush2.bf16.msra.mxu0 0
        %888 = vmatprep.subr.bf16.mxu0 0
        %889 = vmatpush2.bf16.msra.mxu0 0
        %890 = vmatprep.subr.bf16.mxu0 0
        %891 = vmatpush2.bf16.msra.mxu0 0
        %892 = vmatprep.subr.bf16.mxu0 0
        %893 = vmatpush2.bf16.msra.mxu0 0
        %894 = vmatprep.mubr.bf16.mxu0 0
        %895 = vmatmul.mubr.bf16.gmra.mxu0 %v812
        %v896 = vpop.f32.mrf.mxu0
        %v897 = vadd.f32 0.0, %v896
        %v898 = vpop.f32.mrf.mxu0
        %v899 = vpop.f32.mrf.mxu0
        %v900 = vadd.f32 0.0, %v899
        %v901 = vpop.f32.mrf.mxu0
        %902 = vdwg.mxu0
        %v903 = vadd.f32 %v768, %v897
        %v904 = vadd.f32 %v771, %v900
        %s905 = scalar_lea.vmem [#allocation6], 192
        %v906 = vld [vmem:[%s905] sm:$0xf]
        %v907 = vld [vmem:[%s905 + $0x4] sm:$0xf]
        %v908 = vld [vmem:[%s905 + $0x8] sm:$0xf]
        %v909 = vld [vmem:[%s905 + $0xc] sm:$0xf]
        %v910 = vld [vmem:[%s905 + $0x10] sm:$0xf]
        %v911 = vld [vmem:[%s905 + $0x14] sm:$0xf]
        %v912 = vld [vmem:[%s905 + $0x18] sm:$0xf]
        %v913 = vld [vmem:[%s905 + $0x1c] sm:$0xf]
        %v914 = vld [vmem:[%s905 + $0x20] sm:$0xf]
        %v915 = vld [vmem:[%s905 + $0x24] sm:$0xf]
        %v916 = vld [vmem:[%s905 + $0x28] sm:$0xf]
        %v917 = vld [vmem:[%s905 + $0x2c] sm:$0xf]
        %v918 = vld [vmem:[%s905 + $0x30] sm:$0xf]
        %v919 = vld [vmem:[%s905 + $0x34] sm:$0xf]
        %v920 = vld [vmem:[%s905 + $0x38] sm:$0xf]
        %v921 = vld [vmem:[%s905 + $0x3c] sm:$0xf]
        %v922 = vpack.c.b16 %v793, %v565
        %v940 = vunpack.c.l.b16 %v906
        %v941 = vunpack.c.l.b16 %v907
        %v942 = vunpack.c.l.b16 %v908
        %v943 = vunpack.c.l.b16 %v909
        %v944 = vunpack.c.l.b16 %v910
        %v945 = vunpack.c.l.b16 %v911
        %v946 = vunpack.c.l.b16 %v912
        %v947 = vunpack.c.l.b16 %v913
        %v948 = vunpack.c.l.b16 %v914
        %v949 = vunpack.c.l.b16 %v915
        %v950 = vunpack.c.l.b16 %v916
        %v951 = vunpack.c.l.b16 %v917
        %v952 = vunpack.c.l.b16 %v918
        %v953 = vunpack.c.l.b16 %v919
        %v954 = vunpack.c.l.b16 %v920
        %v955 = vunpack.c.l.b16 %v921
        %v956 = vpack.c.b16 %v941, %v940
        %v957 = vpack.c.b16 %v943, %v942
        %v958 = vpack.c.b16 %v945, %v944
        %v959 = vpack.c.b16 %v947, %v946
        %v960 = vpack.c.b16 %v949, %v948
        %v961 = vpack.c.b16 %v951, %v950
        %v962 = vpack.c.b16 %v953, %v952
        %v963 = vpack.c.b16 %v955, %v954
        %972 = vmatprep.subr.bf16.mxu0 0
        %973 = vmatpush1.bf16.msra.mxu0 %v963
        %974 = vmatprep.subr.bf16.mxu0 0
        %975 = vmatpush1.bf16.msra.mxu0 %v962
        %976 = vmatprep.subr.bf16.mxu0 0
        %977 = vmatpush1.bf16.msra.mxu0 %v961
        %978 = vmatprep.subr.bf16.mxu0 0
        %979 = vmatpush1.bf16.msra.mxu0 %v960
        %980 = vmatprep.subr.bf16.mxu0 0
        %981 = vmatpush1.bf16.msra.mxu0 %v959
        %982 = vmatprep.subr.bf16.mxu0 0
        %983 = vmatpush1.bf16.msra.mxu0 %v958
        %984 = vmatprep.subr.bf16.mxu0 0
        %985 = vmatpush1.bf16.msra.mxu0 %v957
        %986 = vmatprep.subr.bf16.mxu0 0
        %987 = vmatpush1.bf16.msra.mxu0 %v956
        %988 = vmatprep.subr.bf16.mxu0 0
        %989 = vmatpush2.bf16.msra.mxu0 0
        %990 = vmatprep.subr.bf16.mxu0 0
        %991 = vmatpush2.bf16.msra.mxu0 0
        %992 = vmatprep.subr.bf16.mxu0 0
        %993 = vmatpush2.bf16.msra.mxu0 0
        %994 = vmatprep.subr.bf16.mxu0 0
        %995 = vmatpush2.bf16.msra.mxu0 0
        %996 = vmatprep.subr.bf16.mxu0 0
        %997 = vmatpush2.bf16.msra.mxu0 0
        %998 = vmatprep.subr.bf16.mxu0 0
        %999 = vmatpush2.bf16.msra.mxu0 0
        %1000 = vmatprep.subr.bf16.mxu0 0
        %1001 = vmatpush2.bf16.msra.mxu0 0
        %1002 = vmatprep.subr.bf16.mxu0 0
        %1003 = vmatpush2.bf16.msra.mxu0 0
        %1004 = vmatprep.mubr.bf16.mxu0 0
        %1005 = vmatmul.mubr.bf16.gmra.mxu0 %v922
        %v1006 = vpop.f32.mrf.mxu0
        %v1007 = vadd.f32 0.0, %v1006
        %v1008 = vpop.f32.mrf.mxu0
        %v1009 = vpop.f32.mrf.mxu0
        %v1010 = vadd.f32 0.0, %v1009
        %v1011 = vpop.f32.mrf.mxu0
        %1012 = vdwg.mxu0
        %v1013 = vadd.f32 %v903, %v1007
        %v1014 = vadd.f32 %v904, %v1010
        %v1015 = vld [vmem:[#allocation2 + $0x4] sm:$0xf]
        %v1016 = vld [vmem:[#allocation2 + $0x8] sm:$0xf]
        %v1017 = vld [vmem:[#allocation2 + $0xc] sm:$0x1]
        %s1018 = scalar_lea.vmem [#allocation6], 256
        %v1019 = vld [vmem:[%s1018] sm:$0xf]
        %v1020 = vld [vmem:[%s1018 + $0x4] sm:$0xf]
        %v1021 = vld [vmem:[%s1018 + $0x8] sm:$0xf]
        %v1022 = vld [vmem:[%s1018 + $0xc] sm:$0xf]
        %v1023 = vld [vmem:[%s1018 + $0x10] sm:$0xf]
        %v1024 = vld [vmem:[%s1018 + $0x14] sm:$0xf]
        %v1025 = vld [vmem:[%s1018 + $0x18] sm:$0xf]
        %v1026 = vld [vmem:[%s1018 + $0x1c] sm:$0xf]
        %v1027 = vld [vmem:[%s1018 + $0x20] sm:$0xf]
        %v1028 = vld [vmem:[%s1018 + $0x24] sm:$0xf]
        %v1029 = vld [vmem:[%s1018 + $0x28] sm:$0xf]
        %v1030 = vld [vmem:[%s1018 + $0x2c] sm:$0xf]
        %v1031 = vld [vmem:[%s1018 + $0x30] sm:$0xf]
        %v1032 = vld [vmem:[%s1018 + $0x34] sm:$0xf]
        %v1033 = vld [vmem:[%s1018 + $0x38] sm:$0xf]
        %v1034 = vld [vmem:[%s1018 + $0x3c] sm:$0xf]
        %v1038 = vunpack.c.l.b16 %v1015
        %v1039 = vunpack.c.l.b16 %v1016
        %v1040 = vunpack.c.l.b16 %v1017
        %v1041 = vpack.c.b16 %v1039, %v1038
        %v1042 = vpack.c.b16 %v1040, %v1040
        %vm1043 = vsmask.f32 7424
        %v1045 = vshrl.u32 %v1041, 16
        %v1047 = vshll.u32 %v1041, 16
        %v1049 = vrot.slane %v1047, 1
        %v1050 = vor.u32 %v1045, %v1049
        %v1052 = vshll.u32 %v1042, 16
        %v1054 = vrot.slane %v1052, 1
        %v1055 = vsel %vm1043, %v1050, %v1054
        %v1073 = vunpack.c.l.b16 %v1019
        %v1074 = vunpack.c.l.b16 %v1020
        %v1075 = vunpack.c.l.b16 %v1021
        %v1076 = vunpack.c.l.b16 %v1022
        %v1077 = vunpack.c.l.b16 %v1023
        %v1078 = vunpack.c.l.b16 %v1024
        %v1079 = vunpack.c.l.b16 %v1025
        %v1080 = vunpack.c.l.b16 %v1026
        %v1081 = vunpack.c.l.b16 %v1027
        %v1082 = vunpack.c.l.b16 %v1028
        %v1083 = vunpack.c.l.b16 %v1029
        %v1084 = vunpack.c.l.b16 %v1030
        %v1085 = vunpack.c.l.b16 %v1031
        %v1086 = vunpack.c.l.b16 %v1032
        %v1087 = vunpack.c.l.b16 %v1033
        %v1088 = vunpack.c.l.b16 %v1034
        %v1089 = vpack.c.b16 %v1074, %v1073
        %v1090 = vpack.c.b16 %v1076, %v1075
        %v1091 = vpack.c.b16 %v1078, %v1077
        %v1092 = vpack.c.b16 %v1080, %v1079
        %v1093 = vpack.c.b16 %v1082, %v1081
        %v1094 = vpack.c.b16 %v1084, %v1083
        %v1095 = vpack.c.b16 %v1086, %v1085
        %v1096 = vpack.c.b16 %v1088, %v1087
        %1105 = vmatprep.subr.bf16.mxu0 0
        %1106 = vmatpush1.bf16.msra.mxu0 %v1096
        %1107 = vmatprep.subr.bf16.mxu0 0
        %1108 = vmatpush1.bf16.msra.mxu0 %v1095
        %1109 = vmatprep.subr.bf16.mxu0 0
        %1110 = vmatpush1.bf16.msra.mxu0 %v1094
        %1111 = vmatprep.subr.bf16.mxu0 0
        %1112 = vmatpush1.bf16.msra.mxu0 %v1093
        %1113 = vmatprep.subr.bf16.mxu0 0
        %1114 = vmatpush1.bf16.msra.mxu0 %v1092
        %1115 = vmatprep.subr.bf16.mxu0 0
        %1116 = vmatpush1.bf16.msra.mxu0 %v1091
        %1117 = vmatprep.subr.bf16.mxu0 0
        %1118 = vmatpush1.bf16.msra.mxu0 %v1090
        %1119 = vmatprep.subr.bf16.mxu0 0
        %1120 = vmatpush1.bf16.msra.mxu0 %v1089
        %1121 = vmatprep.subr.bf16.mxu0 0
        %1122 = vmatpush2.bf16.msra.mxu0 0
        %1123 = vmatprep.subr.bf16.mxu0 0
        %1124 = vmatpush2.bf16.msra.mxu0 0
        %1125 = vmatprep.subr.bf16.mxu0 0
        %1126 = vmatpush2.bf16.msra.mxu0 0
        %1127 = vmatprep.subr.bf16.mxu0 0
        %1128 = vmatpush2.bf16.msra.mxu0 0
        %1129 = vmatprep.subr.bf16.mxu0 0
        %1130 = vmatpush2.bf16.msra.mxu0 0
        %1131 = vmatprep.subr.bf16.mxu0 0
        %1132 = vmatpush2.bf16.msra.mxu0 0
        %1133 = vmatprep.subr.bf16.mxu0 0
        %1134 = vmatpush2.bf16.msra.mxu0 0
        %1135 = vmatprep.subr.bf16.mxu0 0
        %1136 = vmatpush2.bf16.msra.mxu0 0
        %1137 = vmatprep.mubr.bf16.mxu0 0
        %1138 = vmatmul.mubr.bf16.gmra.mxu0 %v1055
        %v1139 = vpop.f32.mrf.mxu0
        %v1140 = vadd.f32 0.0, %v1139
        %v1141 = vpop.f32.mrf.mxu0
        %v1142 = vpop.f32.mrf.mxu0
        %v1143 = vadd.f32 0.0, %v1142
        %v1144 = vpop.f32.mrf.mxu0
        %1145 = vdwg.mxu0
        %v1146 = vadd.f32 %v1013, %v1140
        %v1147 = vadd.f32 %v1014, %v1143
        %v1148 = vld [vmem:[#allocation2 + $0x4] sm:$0xe]
        %s1149 = scalar_lea.vmem [#allocation6], 320
        %v1150 = vld [vmem:[%s1149] sm:$0xf]
        %v1151 = vld [vmem:[%s1149 + $0x4] sm:$0xf]
        %v1152 = vld [vmem:[%s1149 + $0x8] sm:$0xf]
        %v1153 = vld [vmem:[%s1149 + $0xc] sm:$0xf]
        %v1154 = vld [vmem:[%s1149 + $0x10] sm:$0xf]
        %v1155 = vld [vmem:[%s1149 + $0x14] sm:$0xf]
        %v1156 = vld [vmem:[%s1149 + $0x18] sm:$0xf]
        %v1157 = vld [vmem:[%s1149 + $0x1c] sm:$0xf]
        %v1158 = vld [vmem:[%s1149 + $0x20] sm:$0xf]
        %v1159 = vld [vmem:[%s1149 + $0x24] sm:$0xf]
        %v1160 = vld [vmem:[%s1149 + $0x28] sm:$0xf]
        %v1161 = vld [vmem:[%s1149 + $0x2c] sm:$0xf]
        %v1162 = vld [vmem:[%s1149 + $0x30] sm:$0xf]
        %v1163 = vld [vmem:[%s1149 + $0x34] sm:$0xf]
        %v1164 = vld [vmem:[%s1149 + $0x38] sm:$0xf]
        %v1165 = vld [vmem:[%s1149 + $0x3c] sm:$0xf]
        %v1167 = vunpack.c.l.b16 %v1148
        %v1168 = vpack.c.b16 %v1039, %v1167
        %vm1169 = vcmask 1046528
        %v1170 = vrot.slane %v1168, 1
        %v1171 = vrot.slane %v1042, 1
        %v1172 = vsel %vm1169, %v1170, %v1171
        %v1190 = vunpack.c.l.b16 %v1150
        %v1191 = vunpack.c.l.b16 %v1151
        %v1192 = vunpack.c.l.b16 %v1152
        %v1193 = vunpack.c.l.b16 %v1153
        %v1194 = vunpack.c.l.b16 %v1154
        %v1195 = vunpack.c.l.b16 %v1155
        %v1196 = vunpack.c.l.b16 %v1156
        %v1197 = vunpack.c.l.b16 %v1157
        %v1198 = vunpack.c.l.b16 %v1158
        %v1199 = vunpack.c.l.b16 %v1159
        %v1200 = vunpack.c.l.b16 %v1160
        %v1201 = vunpack.c.l.b16 %v1161
        %v1202 = vunpack.c.l.b16 %v1162
        %v1203 = vunpack.c.l.b16 %v1163
        %v1204 = vunpack.c.l.b16 %v1164
        %v1205 = vunpack.c.l.b16 %v1165
        %v1206 = vpack.c.b16 %v1191, %v1190
        %v1207 = vpack.c.b16 %v1193, %v1192
        %v1208 = vpack.c.b16 %v1195, %v1194
        %v1209 = vpack.c.b16 %v1197, %v1196
        %v1210 = vpack.c.b16 %v1199, %v1198
        %v1211 = vpack.c.b16 %v1201, %v1200
        %v1212 = vpack.c.b16 %v1203, %v1202
        %v1213 = vpack.c.b16 %v1205, %v1204
        %1222 = vmatprep.subr.bf16.mxu0 0
        %1223 = vmatpush1.bf16.msra.mxu0 %v1213
        %1224 = vmatprep.subr.bf16.mxu0 0
        %1225 = vmatpush1.bf16.msra.mxu0 %v1212
        %1226 = vmatprep.subr.bf16.mxu0 0
        %1227 = vmatpush1.bf16.msra.mxu0 %v1211
        %1228 = vmatprep.subr.bf16.mxu0 0
        %1229 = vmatpush1.bf16.msra.mxu0 %v1210
        %1230 = vmatprep.subr.bf16.mxu0 0
        %1231 = vmatpush1.bf16.msra.mxu0 %v1209
        %1232 = vmatprep.subr.bf16.mxu0 0
        %1233 = vmatpush1.bf16.msra.mxu0 %v1208
        %1234 = vmatprep.subr.bf16.mxu0 0
        %1235 = vmatpush1.bf16.msra.mxu0 %v1207
        %1236 = vmatprep.subr.bf16.mxu0 0
        %1237 = vmatpush1.bf16.msra.mxu0 %v1206
        %1238 = vmatprep.subr.bf16.mxu0 0
        %1239 = vmatpush2.bf16.msra.mxu0 0
        %1240 = vmatprep.subr.bf16.mxu0 0
        %1241 = vmatpush2.bf16.msra.mxu0 0
        %1242 = vmatprep.subr.bf16.mxu0 0
        %1243 = vmatpush2.bf16.msra.mxu0 0
        %1244 = vmatprep.subr.bf16.mxu0 0
        %1245 = vmatpush2.bf16.msra.mxu0 0
        %1246 = vmatprep.subr.bf16.mxu0 0
        %1247 = vmatpush2.bf16.msra.mxu0 0
        %1248 = vmatprep.subr.bf16.mxu0 0
        %1249 = vmatpush2.bf16.msra.mxu0 0
        %1250 = vmatprep.subr.bf16.mxu0 0
        %1251 = vmatpush2.bf16.msra.mxu0 0
        %1252 = vmatprep.subr.bf16.mxu0 0
        %1253 = vmatpush2.bf16.msra.mxu0 0
        %1254 = vmatprep.mubr.bf16.mxu0 0
        %1255 = vmatmul.mubr.bf16.gmra.mxu0 %v1172
        %v1256 = vpop.f32.mrf.mxu0
        %v1257 = vadd.f32 0.0, %v1256
        %v1258 = vpop.f32.mrf.mxu0
        %v1259 = vpop.f32.mrf.mxu0
        %v1260 = vadd.f32 0.0, %v1259
        %v1261 = vpop.f32.mrf.mxu0
        %1262 = vdwg.mxu0
        %v1263 = vadd.f32 %v1146, %v1257
        %v1264 = vadd.f32 %v1147, %v1260
        %v1265 = vld [vmem:[#allocation2 + $0xc] sm:$0x3]
        %s1266 = scalar_lea.vmem [#allocation6], 384
        %v1267 = vld [vmem:[%s1266] sm:$0xf]
        %v1268 = vld [vmem:[%s1266 + $0x4] sm:$0xf]
        %v1269 = vld [vmem:[%s1266 + $0x8] sm:$0xf]
        %v1270 = vld [vmem:[%s1266 + $0xc] sm:$0xf]
        %v1271 = vld [vmem:[%s1266 + $0x10] sm:$0xf]
        %v1272 = vld [vmem:[%s1266 + $0x14] sm:$0xf]
        %v1273 = vld [vmem:[%s1266 + $0x18] sm:$0xf]
        %v1274 = vld [vmem:[%s1266 + $0x1c] sm:$0xf]
        %v1275 = vld [vmem:[%s1266 + $0x20] sm:$0xf]
        %v1276 = vld [vmem:[%s1266 + $0x24] sm:$0xf]
        %v1277 = vld [vmem:[%s1266 + $0x28] sm:$0xf]
        %v1278 = vld [vmem:[%s1266 + $0x2c] sm:$0xf]
        %v1279 = vld [vmem:[%s1266 + $0x30] sm:$0xf]
        %v1280 = vld [vmem:[%s1266 + $0x34] sm:$0xf]
        %v1281 = vld [vmem:[%s1266 + $0x38] sm:$0xf]
        %v1282 = vld [vmem:[%s1266 + $0x3c] sm:$0xf]
        %v1284 = vunpack.c.l.b16 %v1265
        %v1285 = vpack.c.b16 %v1284, %v1284
        %vm1286 = vsmask.f32 6400
        %v1288 = vshrl.u32 %v1168, 16
        %v1290 = vrot.slane %v1288, 1
        %v1291 = vshll.u32 %v1168, 16
        %v1293 = vrot.slane %v1291, 2
        %v1294 = vor.u32 %v1290, %v1293
        %v1296 = vshrl.u32 %v1285, 16
        %v1298 = vrot.slane %v1296, 1
        %v1299 = vshll.u32 %v1285, 16
        %v1301 = vrot.slane %v1299, 2
        %v1302 = vor.u32 %v1298, %v1301
        %v1303 = vsel %vm1286, %v1294, %v1302
        %v1321 = vunpack.c.l.b16 %v1267
        %v1322 = vunpack.c.l.b16 %v1268
        %v1323 = vunpack.c.l.b16 %v1269
        %v1324 = vunpack.c.l.b16 %v1270
        %v1325 = vunpack.c.l.b16 %v1271
        %v1326 = vunpack.c.l.b16 %v1272
        %v1327 = vunpack.c.l.b16 %v1273
        %v1328 = vunpack.c.l.b16 %v1274
        %v1329 = vunpack.c.l.b16 %v1275
        %v1330 = vunpack.c.l.b16 %v1276
        %v1331 = vunpack.c.l.b16 %v1277
        %v1332 = vunpack.c.l.b16 %v1278
        %v1333 = vunpack.c.l.b16 %v1279
        %v1334 = vunpack.c.l.b16 %v1280
        %v1335 = vunpack.c.l.b16 %v1281
        %v1336 = vunpack.c.l.b16 %v1282
        %v1337 = vpack.c.b16 %v1322, %v1321
        %v1338 = vpack.c.b16 %v1324, %v1323
        %v1339 = vpack.c.b16 %v1326, %v1325
        %v1340 = vpack.c.b16 %v1328, %v1327
        %v1341 = vpack.c.b16 %v1330, %v1329
        %v1342 = vpack.c.b16 %v1332, %v1331
        %v1343 = vpack.c.b16 %v1334, %v1333
        %v1344 = vpack.c.b16 %v1336, %v1335
        %1353 = vmatprep.subr.bf16.mxu0 0
        %1354 = vmatpush1.bf16.msra.mxu0 %v1344
        %1355 = vmatprep.subr.bf16.mxu0 0
        %1356 = vmatpush1.bf16.msra.mxu0 %v1343
        %1357 = vmatprep.subr.bf16.mxu0 0
        %1358 = vmatpush1.bf16.msra.mxu0 %v1342
        %1359 = vmatprep.subr.bf16.mxu0 0
        %1360 = vmatpush1.bf16.msra.mxu0 %v1341
        %1361 = vmatprep.subr.bf16.mxu0 0
        %1362 = vmatpush1.bf16.msra.mxu0 %v1340
        %1363 = vmatprep.subr.bf16.mxu0 0
        %1364 = vmatpush1.bf16.msra.mxu0 %v1339
        %1365 = vmatprep.subr.bf16.mxu0 0
        %1366 = vmatpush1.bf16.msra.mxu0 %v1338
        %1367 = vmatprep.subr.bf16.mxu0 0
        %1368 = vmatpush1.bf16.msra.mxu0 %v1337
        %1369 = vmatprep.subr.bf16.mxu0 0
        %1370 = vmatpush2.bf16.msra.mxu0 0
        %1371 = vmatprep.subr.bf16.mxu0 0
        %1372 = vmatpush2.bf16.msra.mxu0 0
        %1373 = vmatprep.subr.bf16.mxu0 0
        %1374 = vmatpush2.bf16.msra.mxu0 0
        %1375 = vmatprep.subr.bf16.mxu0 0
        %1376 = vmatpush2.bf16.msra.mxu0 0
        %1377 = vmatprep.subr.bf16.mxu0 0
        %1378 = vmatpush2.bf16.msra.mxu0 0
        %1379 = vmatprep.subr.bf16.mxu0 0
        %1380 = vmatpush2.bf16.msra.mxu0 0
        %1381 = vmatprep.subr.bf16.mxu0 0
        %1382 = vmatpush2.bf16.msra.mxu0 0
        %1383 = vmatprep.subr.bf16.mxu0 0
        %1384 = vmatpush2.bf16.msra.mxu0 0
        %1385 = vmatprep.mubr.bf16.mxu0 0
        %1386 = vmatmul.mubr.bf16.gmra.mxu0 %v1303
        %v1387 = vpop.f32.mrf.mxu0
        %v1388 = vadd.f32 0.0, %v1387
        %v1389 = vpop.f32.mrf.mxu0
        %v1390 = vpop.f32.mrf.mxu0
        %v1391 = vadd.f32 0.0, %v1390
        %v1392 = vpop.f32.mrf.mxu0
        %1393 = vdwg.mxu0
        %v1394 = vadd.f32 %v1263, %v1388
        %v1395 = vadd.f32 %v1264, %v1391
        %v1396 = vld [vmem:[%s2] sm:$0x1]
        %v1398 = vlaneseq
        %v1399 = vshrl.u32 %v1398, 7
        %v1400 = vsub.s32 0, %v1399
        %v1401 = vrot.slane %v1396, %v1400
        %v1403 = vmul.f32 %v1394, %v1401
        %v1404 = vmul.f32 %v1395, %v1401
        %v1405 = vld [vmem:[%s3] sm:$0x1]
        %v1407 = vlaneseq
        %v1408 = vshrl.u32 %v1407, 7
        %v1409 = vsub.s32 0, %v1408
        %v1410 = vrot.slane %v1405, %v1409
        %v1412 = vadd.f32 %v1403, %v1410
        %v1413 = vadd.f32 %v1404, %v1410
        %v1414 = vmax.f32 %v1412, 0.0
        %v1415 = vmax.f32 %v1413, 0.0
        %v1416 = vpack.c.bf16 %v1415, %v1414
        %v1418 = vunpack.c.l.b16 %v1416
        %v1419 = vunpack.c.h.b16 %v1416
        %v1420 = vpack.c.b16 %v1418, %v1418
        %v1421 = vpack.c.b16 %v1419, %v1419
        %1424 = vst [vmem:[#allocation2 + $0x4] sm:$0xf] %v1420
        %1425 = vst [vmem:[#allocation2 + $0x8] sm:$0xf] %v1421
        %v1426 = vld [vmem:[#allocation2] sm:$0x8]
        %v1427 = vld [vmem:[#allocation2 + $0x4] sm:$0xf]
        %v1428 = vld [vmem:[#allocation2 + $0x8] sm:$0x7]
        %v1429 = vld [vmem:[#allocation8] sm:$0xf]
        %v1430 = vld [vmem:[#allocation8 + $0x4] sm:$0xf]
        %v1431 = vld [vmem:[#allocation8 + $0x8] sm:$0xf]
        %v1432 = vld [vmem:[#allocation8 + $0xc] sm:$0xf]
        %v1433 = vld [vmem:[#allocation8 + $0x10] sm:$0xf]
        %v1434 = vld [vmem:[#allocation8 + $0x14] sm:$0xf]
        %v1435 = vld [vmem:[#allocation8 + $0x18] sm:$0xf]
        %v1436 = vld [vmem:[#allocation8 + $0x1c] sm:$0xf]
        %v1437 = vld [vmem:[#allocation8 + $0x20] sm:$0xf]
        %v1438 = vld [vmem:[#allocation8 + $0x24] sm:$0xf]
        %v1439 = vld [vmem:[#allocation8 + $0x28] sm:$0xf]
        %v1440 = vld [vmem:[#allocation8 + $0x2c] sm:$0xf]
        %v1441 = vld [vmem:[#allocation8 + $0x30] sm:$0xf]
        %v1442 = vld [vmem:[#allocation8 + $0x34] sm:$0xf]
        %v1443 = vld [vmem:[#allocation8 + $0x38] sm:$0xf]
        %v1444 = vld [vmem:[#allocation8 + $0x3c] sm:$0xf]
        %v1445 = vld [vmem:[#allocation2 + $0x8] sm:$0xf]
        %s1446 = scalar_lea.vmem [#allocation8], 64
        %v1447 = vld [vmem:[%s1446] sm:$0xf]
        %v1448 = vld [vmem:[%s1446 + $0x4] sm:$0xf]
        %v1449 = vld [vmem:[%s1446 + $0x8] sm:$0xf]
        %v1450 = vld [vmem:[%s1446 + $0xc] sm:$0xf]
        %v1451 = vld [vmem:[%s1446 + $0x10] sm:$0xf]
        %v1452 = vld [vmem:[%s1446 + $0x14] sm:$0xf]
        %v1453 = vld [vmem:[%s1446 + $0x18] sm:$0xf]
        %v1454 = vld [vmem:[%s1446 + $0x1c] sm:$0xf]
        %v1455 = vld [vmem:[%s1446 + $0x20] sm:$0xf]
        %v1456 = vld [vmem:[%s1446 + $0x24] sm:$0xf]
        %v1457 = vld [vmem:[%s1446 + $0x28] sm:$0xf]
        %v1458 = vld [vmem:[%s1446 + $0x2c] sm:$0xf]
        %v1459 = vld [vmem:[%s1446 + $0x30] sm:$0xf]
        %v1460 = vld [vmem:[%s1446 + $0x34] sm:$0xf]
        %v1461 = vld [vmem:[%s1446 + $0x38] sm:$0xf]
        %v1462 = vld [vmem:[%s1446 + $0x3c] sm:$0xf]
        %v1466 = vunpack.c.l.b16 %v1426
        %v1467 = vunpack.c.l.b16 %v1427
        %v1468 = vunpack.c.l.b16 %v1445
        %v1469 = vpack.c.b16 %v1467, %v1466
        %v1470 = vpack.c.b16 %v1468, %v1468
        %v1472 = vshrl.u32 %v1469, 16
        %v1474 = vrot.slane %v1472, 3
        %v1475 = vshll.u32 %v1469, 16
        %v1477 = vrot.slane %v1475, 4
        %v1478 = vor.u32 %v1474, %v1477
        %v1480 = vshrl.u32 %v1470, 16
        %v1482 = vrot.slane %v1480, 3
        %v1483 = vshll.u32 %v1470, 16
        %v1485 = vrot.slane %v1483, 4
        %v1486 = vor.u32 %v1482, %v1485
        %v1487 = vsel %vm795, %v1478, %v1486
        %v1505 = vunpack.c.l.b16 %v1447
        %v1506 = vunpack.c.l.b16 %v1448
        %v1507 = vunpack.c.l.b16 %v1449
        %v1508 = vunpack.c.l.b16 %v1450
        %v1509 = vunpack.c.l.b16 %v1451
        %v1510 = vunpack.c.l.b16 %v1452
        %v1511 = vunpack.c.l.b16 %v1453
        %v1512 = vunpack.c.l.b16 %v1454
        %v1513 = vunpack.c.l.b16 %v1455
        %v1514 = vunpack.c.l.b16 %v1456
        %v1515 = vunpack.c.l.b16 %v1457
        %v1516 = vunpack.c.l.b16 %v1458
        %v1517 = vunpack.c.l.b16 %v1459
        %v1518 = vunpack.c.l.b16 %v1460
        %v1519 = vunpack.c.l.b16 %v1461
        %v1520 = vunpack.c.l.b16 %v1462
        %v1521 = vpack.c.b16 %v1506, %v1505
        %v1522 = vpack.c.b16 %v1508, %v1507
        %v1523 = vpack.c.b16 %v1510, %v1509
        %v1524 = vpack.c.b16 %v1512, %v1511
        %v1525 = vpack.c.b16 %v1514, %v1513
        %v1526 = vpack.c.b16 %v1516, %v1515
        %v1527 = vpack.c.b16 %v1518, %v1517
        %v1528 = vpack.c.b16 %v1520, %v1519
        %1537 = vmatprep.subr.bf16.mxu0 0
        %1538 = vmatpush1.bf16.msra.mxu0 %v1528
        %1539 = vmatprep.subr.bf16.mxu0 0
        %1540 = vmatpush1.bf16.msra.mxu0 %v1527
        %1541 = vmatprep.subr.bf16.mxu0 0
        %1542 = vmatpush1.bf16.msra.mxu0 %v1526
        %1543 = vmatprep.subr.bf16.mxu0 0
        %1544 = vmatpush1.bf16.msra.mxu0 %v1525
        %1545 = vmatprep.subr.bf16.mxu0 0
        %1546 = vmatpush1.bf16.msra.mxu0 %v1524
        %1547 = vmatprep.subr.bf16.mxu0 0
        %1548 = vmatpush1.bf16.msra.mxu0 %v1523
        %1549 = vmatprep.subr.bf16.mxu0 0
        %1550 = vmatpush1.bf16.msra.mxu0 %v1522
        %1551 = vmatprep.subr.bf16.mxu0 0
        %1552 = vmatpush1.bf16.msra.mxu0 %v1521
        %1553 = vmatprep.subr.bf16.mxu0 0
        %1554 = vmatpush2.bf16.msra.mxu0 0
        %1555 = vmatprep.subr.bf16.mxu0 0
        %1556 = vmatpush2.bf16.msra.mxu0 0
        %1557 = vmatprep.subr.bf16.mxu0 0
        %1558 = vmatpush2.bf16.msra.mxu0 0
        %1559 = vmatprep.subr.bf16.mxu0 0
        %1560 = vmatpush2.bf16.msra.mxu0 0
        %1561 = vmatprep.subr.bf16.mxu0 0
        %1562 = vmatpush2.bf16.msra.mxu0 0
        %1563 = vmatprep.subr.bf16.mxu0 0
        %1564 = vmatpush2.bf16.msra.mxu0 0
        %1565 = vmatprep.subr.bf16.mxu0 0
        %1566 = vmatpush2.bf16.msra.mxu0 0
        %1567 = vmatprep.subr.bf16.mxu0 0
        %1568 = vmatpush2.bf16.msra.mxu0 0
        %1569 = vmatprep.mubr.bf16.mxu0 0
        %1570 = vmatmul.mubr.bf16.gmra.mxu0 %v1487
        %v1571 = vpop.f32.mrf.mxu0
        %v1572 = vadd.f32 0.0, %v1571
        %v1573 = vpop.f32.mrf.mxu0
        %v1574 = vpop.f32.mrf.mxu0
        %v1575 = vadd.f32 0.0, %v1574
        %v1576 = vpop.f32.mrf.mxu0
        %1577 = vdwg.mxu0
        %v1579 = vunpack.c.l.b16 %v1428
        %v1580 = vpack.c.b16 %v1579, %v1579
        %v1581 = vrot.slane %v1469, 3
        %v1582 = vrot.slane %v1580, 3
        %v1583 = vsel %vm569, %v1581, %v1582
        %v1601 = vunpack.c.l.b16 %v1429
        %v1602 = vunpack.c.l.b16 %v1430
        %v1603 = vunpack.c.l.b16 %v1431
        %v1604 = vunpack.c.l.b16 %v1432
        %v1605 = vunpack.c.l.b16 %v1433
        %v1606 = vunpack.c.l.b16 %v1434
        %v1607 = vunpack.c.l.b16 %v1435
        %v1608 = vunpack.c.l.b16 %v1436
        %v1609 = vunpack.c.l.b16 %v1437
        %v1610 = vunpack.c.l.b16 %v1438
        %v1611 = vunpack.c.l.b16 %v1439
        %v1612 = vunpack.c.l.b16 %v1440
        %v1613 = vunpack.c.l.b16 %v1441
        %v1614 = vunpack.c.l.b16 %v1442
        %v1615 = vunpack.c.l.b16 %v1443
        %v1616 = vunpack.c.l.b16 %v1444
        %v1617 = vpack.c.b16 %v1602, %v1601
        %v1618 = vpack.c.b16 %v1604, %v1603
        %v1619 = vpack.c.b16 %v1606, %v1605
        %v1620 = vpack.c.b16 %v1608, %v1607
        %v1621 = vpack.c.b16 %v1610, %v1609
        %v1622 = vpack.c.b16 %v1612, %v1611
        %v1623 = vpack.c.b16 %v1614, %v1613
        %v1624 = vpack.c.b16 %v1616, %v1615
        %1633 = vmatprep.subr.bf16.mxu0 0
        %1634 = vmatpush1.bf16.msra.mxu0 %v1624
        %1635 = vmatprep.subr.bf16.mxu0 0
        %1636 = vmatpush1.bf16.msra.mxu0 %v1623
        %1637 = vmatprep.subr.bf16.mxu0 0
        %1638 = vmatpush1.bf16.msra.mxu0 %v1622
        %1639 = vmatprep.subr.bf16.mxu0 0
        %1640 = vmatpush1.bf16.msra.mxu0 %v1621
        %1641 = vmatprep.subr.bf16.mxu0 0
        %1642 = vmatpush1.bf16.msra.mxu0 %v1620
        %1643 = vmatprep.subr.bf16.mxu0 0
        %1644 = vmatpush1.bf16.msra.mxu0 %v1619
        %1645 = vmatprep.subr.bf16.mxu0 0
        %1646 = vmatpush1.bf16.msra.mxu0 %v1618
        %1647 = vmatprep.subr.bf16.mxu0 0
        %1648 = vmatpush1.bf16.msra.mxu0 %v1617
        %1649 = vmatprep.subr.bf16.mxu0 0
        %1650 = vmatpush2.bf16.msra.mxu0 0
        %1651 = vmatprep.subr.bf16.mxu0 0
        %1652 = vmatpush2.bf16.msra.mxu0 0
        %1653 = vmatprep.subr.bf16.mxu0 0
        %1654 = vmatpush2.bf16.msra.mxu0 0
        %1655 = vmatprep.subr.bf16.mxu0 0
        %1656 = vmatpush2.bf16.msra.mxu0 0
        %1657 = vmatprep.subr.bf16.mxu0 0
        %1658 = vmatpush2.bf16.msra.mxu0 0
        %1659 = vmatprep.subr.bf16.mxu0 0
        %1660 = vmatpush2.bf16.msra.mxu0 0
        %1661 = vmatprep.subr.bf16.mxu0 0
        %1662 = vmatpush2.bf16.msra.mxu0 0
        %1663 = vmatprep.subr.bf16.mxu0 0
        %1664 = vmatpush2.bf16.msra.mxu0 0
        %1665 = vmatprep.mubr.bf16.mxu0 0
        %1666 = vmatmul.mubr.bf16.gmra.mxu0 %v1583
        %v1667 = vpop.f32.mrf.mxu0
        %v1668 = vadd.f32 %v1572, %v1667
        %v1669 = vpop.f32.mrf.mxu0
        %v1670 = vpop.f32.mrf.mxu0
        %v1671 = vadd.f32 %v1575, %v1670
        %v1672 = vpop.f32.mrf.mxu0
        %1673 = vdwg.mxu0
        %s1674 = scalar_lea.vmem [#allocation8], 128
        %v1675 = vld [vmem:[%s1674] sm:$0xf]
        %v1676 = vld [vmem:[%s1674 + $0x4] sm:$0xf]
        %v1677 = vld [vmem:[%s1674 + $0x8] sm:$0xf]
        %v1678 = vld [vmem:[%s1674 + $0xc] sm:$0xf]
        %v1679 = vld [vmem:[%s1674 + $0x10] sm:$0xf]
        %v1680 = vld [vmem:[%s1674 + $0x14] sm:$0xf]
        %v1681 = vld [vmem:[%s1674 + $0x18] sm:$0xf]
        %v1682 = vld [vmem:[%s1674 + $0x1c] sm:$0xf]
        %v1683 = vld [vmem:[%s1674 + $0x20] sm:$0xf]
        %v1684 = vld [vmem:[%s1674 + $0x24] sm:$0xf]
        %v1685 = vld [vmem:[%s1674 + $0x28] sm:$0xf]
        %v1686 = vld [vmem:[%s1674 + $0x2c] sm:$0xf]
        %v1687 = vld [vmem:[%s1674 + $0x30] sm:$0xf]
        %v1688 = vld [vmem:[%s1674 + $0x34] sm:$0xf]
        %v1689 = vld [vmem:[%s1674 + $0x38] sm:$0xf]
        %v1690 = vld [vmem:[%s1674 + $0x3c] sm:$0xf]
        %v1691 = vpack.c.b16 %v1468, %v1467
        %v1709 = vunpack.c.l.b16 %v1675
        %v1710 = vunpack.c.l.b16 %v1676
        %v1711 = vunpack.c.l.b16 %v1677
        %v1712 = vunpack.c.l.b16 %v1678
        %v1713 = vunpack.c.l.b16 %v1679
        %v1714 = vunpack.c.l.b16 %v1680
        %v1715 = vunpack.c.l.b16 %v1681
        %v1716 = vunpack.c.l.b16 %v1682
        %v1717 = vunpack.c.l.b16 %v1683
        %v1718 = vunpack.c.l.b16 %v1684
        %v1719 = vunpack.c.l.b16 %v1685
        %v1720 = vunpack.c.l.b16 %v1686
        %v1721 = vunpack.c.l.b16 %v1687
        %v1722 = vunpack.c.l.b16 %v1688
        %v1723 = vunpack.c.l.b16 %v1689
        %v1724 = vunpack.c.l.b16 %v1690
        %v1725 = vpack.c.b16 %v1710, %v1709
        %v1726 = vpack.c.b16 %v1712, %v1711
        %v1727 = vpack.c.b16 %v1714, %v1713
        %v1728 = vpack.c.b16 %v1716, %v1715
        %v1729 = vpack.c.b16 %v1718, %v1717
        %v1730 = vpack.c.b16 %v1720, %v1719
        %v1731 = vpack.c.b16 %v1722, %v1721
        %v1732 = vpack.c.b16 %v1724, %v1723
        %1741 = vmatprep.subr.bf16.mxu0 0
        %1742 = vmatpush1.bf16.msra.mxu0 %v1732
        %1743 = vmatprep.subr.bf16.mxu0 0
        %1744 = vmatpush1.bf16.msra.mxu0 %v1731
        %1745 = vmatprep.subr.bf16.mxu0 0
        %1746 = vmatpush1.bf16.msra.mxu0 %v1730
        %1747 = vmatprep.subr.bf16.mxu0 0
        %1748 = vmatpush1.bf16.msra.mxu0 %v1729
        %1749 = vmatprep.subr.bf16.mxu0 0
        %1750 = vmatpush1.bf16.msra.mxu0 %v1728
        %1751 = vmatprep.subr.bf16.mxu0 0
        %1752 = vmatpush1.bf16.msra.mxu0 %v1727
        %1753 = vmatprep.subr.bf16.mxu0 0
        %1754 = vmatpush1.bf16.msra.mxu0 %v1726
        %1755 = vmatprep.subr.bf16.mxu0 0
        %1756 = vmatpush1.bf16.msra.mxu0 %v1725
        %1757 = vmatprep.subr.bf16.mxu0 0
        %1758 = vmatpush2.bf16.msra.mxu0 0
        %1759 = vmatprep.subr.bf16.mxu0 0
        %1760 = vmatpush2.bf16.msra.mxu0 0
        %1761 = vmatprep.subr.bf16.mxu0 0
        %1762 = vmatpush2.bf16.msra.mxu0 0
        %1763 = vmatprep.subr.bf16.mxu0 0
        %1764 = vmatpush2.bf16.msra.mxu0 0
        %1765 = vmatprep.subr.bf16.mxu0 0
        %1766 = vmatpush2.bf16.msra.mxu0 0
        %1767 = vmatprep.subr.bf16.mxu0 0
        %1768 = vmatpush2.bf16.msra.mxu0 0
        %1769 = vmatprep.subr.bf16.mxu0 0
        %1770 = vmatpush2.bf16.msra.mxu0 0
        %1771 = vmatprep.subr.bf16.mxu0 0
        %1772 = vmatpush2.bf16.msra.mxu0 0
        %1773 = vmatprep.mubr.bf16.mxu0 0
        %1774 = vmatmul.mubr.bf16.gmra.mxu0 %v1691
        %v1775 = vpop.f32.mrf.mxu0
        %v1776 = vadd.f32 0.0, %v1775
        %v1777 = vpop.f32.mrf.mxu0
        %v1778 = vpop.f32.mrf.mxu0
        %v1779 = vadd.f32 0.0, %v1778
        %v1780 = vpop.f32.mrf.mxu0
        %1781 = vdwg.mxu0
        %v1782 = vadd.f32 %v1668, %v1776
        %v1783 = vadd.f32 %v1671, %v1779
        %v1784 = vld [vmem:[#allocation2 + $0x4] sm:$0xf]
        %v1785 = vld [vmem:[#allocation2 + $0x8] sm:$0xf]
        %v1786 = vld [vmem:[#allocation2 + $0xc] sm:$0x1]
        %s1787 = scalar_lea.vmem [#allocation8], 192
        %v1788 = vld [vmem:[%s1787] sm:$0xf]
        %v1789 = vld [vmem:[%s1787 + $0x4] sm:$0xf]
        %v1790 = vld [vmem:[%s1787 + $0x8] sm:$0xf]
        %v1791 = vld [vmem:[%s1787 + $0xc] sm:$0xf]
        %v1792 = vld [vmem:[%s1787 + $0x10] sm:$0xf]
        %v1793 = vld [vmem:[%s1787 + $0x14] sm:$0xf]
        %v1794 = vld [vmem:[%s1787 + $0x18] sm:$0xf]
        %v1795 = vld [vmem:[%s1787 + $0x1c] sm:$0xf]
        %v1796 = vld [vmem:[%s1787 + $0x20] sm:$0xf]
        %v1797 = vld [vmem:[%s1787 + $0x24] sm:$0xf]
        %v1798 = vld [vmem:[%s1787 + $0x28] sm:$0xf]
        %v1799 = vld [vmem:[%s1787 + $0x2c] sm:$0xf]
        %v1800 = vld [vmem:[%s1787 + $0x30] sm:$0xf]
        %v1801 = vld [vmem:[%s1787 + $0x34] sm:$0xf]
        %v1802 = vld [vmem:[%s1787 + $0x38] sm:$0xf]
        %v1803 = vld [vmem:[%s1787 + $0x3c] sm:$0xf]
        %v1807 = vunpack.c.l.b16 %v1784
        %v1808 = vunpack.c.l.b16 %v1785
        %v1809 = vunpack.c.l.b16 %v1786
        %v1810 = vpack.c.b16 %v1808, %v1807
        %v1811 = vpack.c.b16 %v1809, %v1809
        %v1813 = vshrl.u32 %v1810, 16
        %v1815 = vshll.u32 %v1810, 16
        %v1817 = vrot.slane %v1815, 1
        %v1818 = vor.u32 %v1813, %v1817
        %v1820 = vshll.u32 %v1811, 16
        %v1822 = vrot.slane %v1820, 1
        %v1823 = vsel %vm1043, %v1818, %v1822
        %v1841 = vunpack.c.l.b16 %v1788
        %v1842 = vunpack.c.l.b16 %v1789
        %v1843 = vunpack.c.l.b16 %v1790
        %v1844 = vunpack.c.l.b16 %v1791
        %v1845 = vunpack.c.l.b16 %v1792
        %v1846 = vunpack.c.l.b16 %v1793
        %v1847 = vunpack.c.l.b16 %v1794
        %v1848 = vunpack.c.l.b16 %v1795
        %v1849 = vunpack.c.l.b16 %v1796
        %v1850 = vunpack.c.l.b16 %v1797
        %v1851 = vunpack.c.l.b16 %v1798
        %v1852 = vunpack.c.l.b16 %v1799
        %v1853 = vunpack.c.l.b16 %v1800
        %v1854 = vunpack.c.l.b16 %v1801
        %v1855 = vunpack.c.l.b16 %v1802
        %v1856 = vunpack.c.l.b16 %v1803
        %v1857 = vpack.c.b16 %v1842, %v1841
        %v1858 = vpack.c.b16 %v1844, %v1843
        %v1859 = vpack.c.b16 %v1846, %v1845
        %v1860 = vpack.c.b16 %v1848, %v1847
        %v1861 = vpack.c.b16 %v1850, %v1849
        %v1862 = vpack.c.b16 %v1852, %v1851
        %v1863 = vpack.c.b16 %v1854, %v1853
        %v1864 = vpack.c.b16 %v1856, %v1855
        %1873 = vmatprep.subr.bf16.mxu0 0
        %1874 = vmatpush1.bf16.msra.mxu0 %v1864
        %1875 = vmatprep.subr.bf16.mxu0 0
        %1876 = vmatpush1.bf16.msra.mxu0 %v1863
        %1877 = vmatprep.subr.bf16.mxu0 0
        %1878 = vmatpush1.bf16.msra.mxu0 %v1862
        %1879 = vmatprep.subr.bf16.mxu0 0
        %1880 = vmatpush1.bf16.msra.mxu0 %v1861
        %1881 = vmatprep.subr.bf16.mxu0 0
        %1882 = vmatpush1.bf16.msra.mxu0 %v1860
        %1883 = vmatprep.subr.bf16.mxu0 0
        %1884 = vmatpush1.bf16.msra.mxu0 %v1859
        %1885 = vmatprep.subr.bf16.mxu0 0
        %1886 = vmatpush1.bf16.msra.mxu0 %v1858
        %1887 = vmatprep.subr.bf16.mxu0 0
        %1888 = vmatpush1.bf16.msra.mxu0 %v1857
        %1889 = vmatprep.subr.bf16.mxu0 0
        %1890 = vmatpush2.bf16.msra.mxu0 0
        %1891 = vmatprep.subr.bf16.mxu0 0
        %1892 = vmatpush2.bf16.msra.mxu0 0
        %1893 = vmatprep.subr.bf16.mxu0 0
        %1894 = vmatpush2.bf16.msra.mxu0 0
        %1895 = vmatprep.subr.bf16.mxu0 0
        %1896 = vmatpush2.bf16.msra.mxu0 0
        %1897 = vmatprep.subr.bf16.mxu0 0
        %1898 = vmatpush2.bf16.msra.mxu0 0
        %1899 = vmatprep.subr.bf16.mxu0 0
        %1900 = vmatpush2.bf16.msra.mxu0 0
        %1901 = vmatprep.subr.bf16.mxu0 0
        %1902 = vmatpush2.bf16.msra.mxu0 0
        %1903 = vmatprep.subr.bf16.mxu0 0
        %1904 = vmatpush2.bf16.msra.mxu0 0
        %1905 = vmatprep.mubr.bf16.mxu0 0
        %1906 = vmatmul.mubr.bf16.gmra.mxu0 %v1823
        %v1907 = vpop.f32.mrf.mxu0
        %v1908 = vadd.f32 0.0, %v1907
        %v1909 = vpop.f32.mrf.mxu0
        %v1910 = vpop.f32.mrf.mxu0
        %v1911 = vadd.f32 0.0, %v1910
        %v1912 = vpop.f32.mrf.mxu0
        %1913 = vdwg.mxu0
        %v1914 = vadd.f32 %v1782, %v1908
        %v1915 = vadd.f32 %v1783, %v1911
        %v1916 = vld [vmem:[#allocation2 + $0x4] sm:$0xe]
        %s1917 = scalar_lea.vmem [#allocation8], 256
        %v1918 = vld [vmem:[%s1917] sm:$0xf]
        %v1919 = vld [vmem:[%s1917 + $0x4] sm:$0xf]
        %v1920 = vld [vmem:[%s1917 + $0x8] sm:$0xf]
        %v1921 = vld [vmem:[%s1917 + $0xc] sm:$0xf]
        %v1922 = vld [vmem:[%s1917 + $0x10] sm:$0xf]
        %v1923 = vld [vmem:[%s1917 + $0x14] sm:$0xf]
        %v1924 = vld [vmem:[%s1917 + $0x18] sm:$0xf]
        %v1925 = vld [vmem:[%s1917 + $0x1c] sm:$0xf]
        %v1926 = vld [vmem:[%s1917 + $0x20] sm:$0xf]
        %v1927 = vld [vmem:[%s1917 + $0x24] sm:$0xf]
        %v1928 = vld [vmem:[%s1917 + $0x28] sm:$0xf]
        %v1929 = vld [vmem:[%s1917 + $0x2c] sm:$0xf]
        %v1930 = vld [vmem:[%s1917 + $0x30] sm:$0xf]
        %v1931 = vld [vmem:[%s1917 + $0x34] sm:$0xf]
        %v1932 = vld [vmem:[%s1917 + $0x38] sm:$0xf]
        %v1933 = vld [vmem:[%s1917 + $0x3c] sm:$0xf]
        %v1935 = vunpack.c.l.b16 %v1916
        %v1936 = vpack.c.b16 %v1808, %v1935
        %v1937 = vrot.slane %v1936, 1
        %v1938 = vrot.slane %v1811, 1
        %v1939 = vsel %vm1169, %v1937, %v1938
        %v1957 = vunpack.c.l.b16 %v1918
        %v1958 = vunpack.c.l.b16 %v1919
        %v1959 = vunpack.c.l.b16 %v1920
        %v1960 = vunpack.c.l.b16 %v1921
        %v1961 = vunpack.c.l.b16 %v1922
        %v1962 = vunpack.c.l.b16 %v1923
        %v1963 = vunpack.c.l.b16 %v1924
        %v1964 = vunpack.c.l.b16 %v1925
        %v1965 = vunpack.c.l.b16 %v1926
        %v1966 = vunpack.c.l.b16 %v1927
        %v1967 = vunpack.c.l.b16 %v1928
        %v1968 = vunpack.c.l.b16 %v1929
        %v1969 = vunpack.c.l.b16 %v1930
        %v1970 = vunpack.c.l.b16 %v1931
        %v1971 = vunpack.c.l.b16 %v1932
        %v1972 = vunpack.c.l.b16 %v1933
        %v1973 = vpack.c.b16 %v1958, %v1957
        %v1974 = vpack.c.b16 %v1960, %v1959
        %v1975 = vpack.c.b16 %v1962, %v1961
        %v1976 = vpack.c.b16 %v1964, %v1963
        %v1977 = vpack.c.b16 %v1966, %v1965
        %v1978 = vpack.c.b16 %v1968, %v1967
        %v1979 = vpack.c.b16 %v1970, %v1969
        %v1980 = vpack.c.b16 %v1972, %v1971
        %1989 = vmatprep.subr.bf16.mxu0 0
        %1990 = vmatpush1.bf16.msra.mxu0 %v1980
        %1991 = vmatprep.subr.bf16.mxu0 0
        %1992 = vmatpush1.bf16.msra.mxu0 %v1979
        %1993 = vmatprep.subr.bf16.mxu0 0
        %1994 = vmatpush1.bf16.msra.mxu0 %v1978
        %1995 = vmatprep.subr.bf16.mxu0 0
        %1996 = vmatpush1.bf16.msra.mxu0 %v1977
        %1997 = vmatprep.subr.bf16.mxu0 0
        %1998 = vmatpush1.bf16.msra.mxu0 %v1976
        %1999 = vmatprep.subr.bf16.mxu0 0
        %2000 = vmatpush1.bf16.msra.mxu0 %v1975
        %2001 = vmatprep.subr.bf16.mxu0 0
        %2002 = vmatpush1.bf16.msra.mxu0 %v1974
        %2003 = vmatprep.subr.bf16.mxu0 0
        %2004 = vmatpush1.bf16.msra.mxu0 %v1973
        %2005 = vmatprep.subr.bf16.mxu0 0
        %2006 = vmatpush2.bf16.msra.mxu0 0
        %2007 = vmatprep.subr.bf16.mxu0 0
        %2008 = vmatpush2.bf16.msra.mxu0 0
        %2009 = vmatprep.subr.bf16.mxu0 0
        %2010 = vmatpush2.bf16.msra.mxu0 0
        %2011 = vmatprep.subr.bf16.mxu0 0
        %2012 = vmatpush2.bf16.msra.mxu0 0
        %2013 = vmatprep.subr.bf16.mxu0 0
        %2014 = vmatpush2.bf16.msra.mxu0 0
        %2015 = vmatprep.subr.bf16.mxu0 0
        %2016 = vmatpush2.bf16.msra.mxu0 0
        %2017 = vmatprep.subr.bf16.mxu0 0
        %2018 = vmatpush2.bf16.msra.mxu0 0
        %2019 = vmatprep.subr.bf16.mxu0 0
        %2020 = vmatpush2.bf16.msra.mxu0 0
        %2021 = vmatprep.mubr.bf16.mxu0 0
        %2022 = vmatmul.mubr.bf16.gmra.mxu0 %v1939
        %v2023 = vpop.f32.mrf.mxu0
        %v2024 = vadd.f32 0.0, %v2023
        %v2025 = vpop.f32.mrf.mxu0
        %v2026 = vpop.f32.mrf.mxu0
        %v2027 = vadd.f32 0.0, %v2026
        %v2028 = vpop.f32.mrf.mxu0
        %2029 = vdwg.mxu0
        %v2030 = vadd.f32 %v1914, %v2024
        %v2031 = vadd.f32 %v1915, %v2027
        %v2032 = vld [vmem:[%s5] sm:$0x1]
        %v2034 = vlaneseq
        %v2035 = vshrl.u32 %v2034, 7
        %v2036 = vsub.s32 0, %v2035
        %v2037 = vrot.slane %v2032, %v2036
        %v2039 = vmul.f32 %v2030, %v2037
        %v2040 = vmul.f32 %v2031, %v2037
        %v2041 = vld [vmem:[%s6] sm:$0x1]
        %v2043 = vlaneseq
        %v2044 = vshrl.u32 %v2043, 7
        %v2045 = vsub.s32 0, %v2044
        %v2046 = vrot.slane %v2041, %v2045
        %v2048 = vadd.f32 %v2039, %v2046
        %v2049 = vadd.f32 %v2040, %v2046
        %v2050 = vmax.f32 %v2048, 0.0
        %v2051 = vmax.f32 %v2049, 0.0
        %v2052 = vpack.c.bf16 %v2051, %v2050
        %v2054 = vunpack.c.l.b16 %v2052
        %v2055 = vunpack.c.h.b16 %v2052
        %v2056 = vpack.c.b16 %v2054, %v2054
        %v2057 = vpack.c.b16 %v2055, %v2055
        %2060 = vst [vmem:[#allocation2 + $0x4] sm:$0xf] %v2056
        %2061 = vst [vmem:[#allocation2 + $0x8] sm:$0xf] %v2057
        %v2062 = vld [vmem:[#allocation2] sm:$0x8]
        %v2063 = vld [vmem:[#allocation2 + $0x4] sm:$0xf]
        %v2064 = vld [vmem:[#allocation2 + $0x8] sm:$0xf]
        %v2065 = vld [vmem:[#allocation9] sm:$0xf]
        %v2066 = vld [vmem:[#allocation9 + $0x4] sm:$0xf]
        %v2067 = vld [vmem:[#allocation9 + $0x8] sm:$0xf]
        %v2068 = vld [vmem:[#allocation9 + $0xc] sm:$0xf]
        %v2069 = vld [vmem:[#allocation9 + $0x10] sm:$0xf]
        %v2070 = vld [vmem:[#allocation9 + $0x14] sm:$0xf]
        %v2071 = vld [vmem:[#allocation9 + $0x18] sm:$0xf]
        %v2072 = vld [vmem:[#allocation9 + $0x1c] sm:$0xf]
        %v2073 = vld [vmem:[#allocation9 + $0x20] sm:$0xf]
        %v2074 = vld [vmem:[#allocation9 + $0x24] sm:$0xf]
        %v2075 = vld [vmem:[#allocation9 + $0x28] sm:$0xf]
        %v2076 = vld [vmem:[#allocation9 + $0x2c] sm:$0xf]
        %v2077 = vld [vmem:[#allocation9 + $0x30] sm:$0xf]
        %v2078 = vld [vmem:[#allocation9 + $0x34] sm:$0xf]
        %v2079 = vld [vmem:[#allocation9 + $0x38] sm:$0xf]
        %v2080 = vld [vmem:[#allocation9 + $0x3c] sm:$0xf]
        %s2081 = scalar_lea.vmem [#allocation9], 64
        %v2082 = vld [vmem:[%s2081] sm:$0xf]
        %v2083 = vld [vmem:[%s2081 + $0x4] sm:$0xf]
        %v2084 = vld [vmem:[%s2081 + $0x8] sm:$0xf]
        %v2085 = vld [vmem:[%s2081 + $0xc] sm:$0xf]
        %v2086 = vld [vmem:[%s2081 + $0x10] sm:$0xf]
        %v2087 = vld [vmem:[%s2081 + $0x14] sm:$0xf]
        %v2088 = vld [vmem:[%s2081 + $0x18] sm:$0xf]
        %v2089 = vld [vmem:[%s2081 + $0x1c] sm:$0xf]
        %v2090 = vld [vmem:[%s2081 + $0x20] sm:$0xf]
        %v2091 = vld [vmem:[%s2081 + $0x24] sm:$0xf]
        %v2092 = vld [vmem:[%s2081 + $0x28] sm:$0xf]
        %v2093 = vld [vmem:[%s2081 + $0x2c] sm:$0xf]
        %v2094 = vld [vmem:[%s2081 + $0x30] sm:$0xf]
        %v2095 = vld [vmem:[%s2081 + $0x34] sm:$0xf]
        %v2096 = vld [vmem:[%s2081 + $0x38] sm:$0xf]
        %v2097 = vld [vmem:[%s2081 + $0x3c] sm:$0xf]
        %v2100 = vunpack.c.l.b16 %v2063
        %v2101 = vunpack.c.l.b16 %v2064
        %v2102 = vpack.c.b16 %v2101, %v2100
        %v2120 = vunpack.c.l.b16 %v2082
        %v2121 = vunpack.c.l.b16 %v2083
        %v2122 = vunpack.c.l.b16 %v2084
        %v2123 = vunpack.c.l.b16 %v2085
        %v2124 = vunpack.c.l.b16 %v2086
        %v2125 = vunpack.c.l.b16 %v2087
        %v2126 = vunpack.c.l.b16 %v2088
        %v2127 = vunpack.c.l.b16 %v2089
        %v2128 = vunpack.c.l.b16 %v2090
        %v2129 = vunpack.c.l.b16 %v2091
        %v2130 = vunpack.c.l.b16 %v2092
        %v2131 = vunpack.c.l.b16 %v2093
        %v2132 = vunpack.c.l.b16 %v2094
        %v2133 = vunpack.c.l.b16 %v2095
        %v2134 = vunpack.c.l.b16 %v2096
        %v2135 = vunpack.c.l.b16 %v2097
        %v2136 = vpack.c.b16 %v2121, %v2120
        %v2137 = vpack.c.b16 %v2123, %v2122
        %v2138 = vpack.c.b16 %v2125, %v2124
        %v2139 = vpack.c.b16 %v2127, %v2126
        %v2140 = vpack.c.b16 %v2129, %v2128
        %v2141 = vpack.c.b16 %v2131, %v2130
        %v2142 = vpack.c.b16 %v2133, %v2132
        %v2143 = vpack.c.b16 %v2135, %v2134
        %2152 = vmatprep.subr.bf16.mxu0 0
        %2153 = vmatpush1.bf16.msra.mxu0 %v2143
        %2154 = vmatprep.subr.bf16.mxu0 0
        %2155 = vmatpush1.bf16.msra.mxu0 %v2142
        %2156 = vmatprep.subr.bf16.mxu0 0
        %2157 = vmatpush1.bf16.msra.mxu0 %v2141
        %2158 = vmatprep.subr.bf16.mxu0 0
        %2159 = vmatpush1.bf16.msra.mxu0 %v2140
        %2160 = vmatprep.subr.bf16.mxu0 0
        %2161 = vmatpush1.bf16.msra.mxu0 %v2139
        %2162 = vmatprep.subr.bf16.mxu0 0
        %2163 = vmatpush1.bf16.msra.mxu0 %v2138
        %2164 = vmatprep.subr.bf16.mxu0 0
        %2165 = vmatpush1.bf16.msra.mxu0 %v2137
        %2166 = vmatprep.subr.bf16.mxu0 0
        %2167 = vmatpush1.bf16.msra.mxu0 %v2136
        %2168 = vmatprep.subr.bf16.mxu0 0
        %2169 = vmatpush2.bf16.msra.mxu0 0
        %2170 = vmatprep.subr.bf16.mxu0 0
        %2171 = vmatpush2.bf16.msra.mxu0 0
        %2172 = vmatprep.subr.bf16.mxu0 0
        %2173 = vmatpush2.bf16.msra.mxu0 0
        %2174 = vmatprep.subr.bf16.mxu0 0
        %2175 = vmatpush2.bf16.msra.mxu0 0
        %2176 = vmatprep.subr.bf16.mxu0 0
        %2177 = vmatpush2.bf16.msra.mxu0 0
        %2178 = vmatprep.subr.bf16.mxu0 0
        %2179 = vmatpush2.bf16.msra.mxu0 0
        %2180 = vmatprep.subr.bf16.mxu0 0
        %2181 = vmatpush2.bf16.msra.mxu0 0
        %2182 = vmatprep.subr.bf16.mxu0 0
        %2183 = vmatpush2.bf16.msra.mxu0 0
        %2184 = vmatprep.mubr.bf16.mxu0 0
        %2185 = vmatmul.mubr.bf16.gmra.mxu0 %v2102
        %v2186 = vpop.f32.mrf.mxu0
        %v2187 = vadd.f32 0.0, %v2186
        %v2188 = vpop.f32.mrf.mxu0
        %v2189 = vpop.f32.mrf.mxu0
        %v2190 = vadd.f32 0.0, %v2189
        %v2191 = vpop.f32.mrf.mxu0
        %2192 = vdwg.mxu0
        %v2194 = vunpack.c.l.b16 %v2062
        %v2195 = vpack.c.b16 %v2100, %v2194
        %v2196 = vpack.c.b16 %v2101, %v2101
        %v2198 = vshrl.u32 %v2195, 16
        %v2200 = vrot.slane %v2198, 3
        %v2201 = vshll.u32 %v2195, 16
        %v2203 = vrot.slane %v2201, 4
        %v2204 = vor.u32 %v2200, %v2203
        %v2206 = vshrl.u32 %v2196, 16
        %v2208 = vrot.slane %v2206, 3
        %v2209 = vshll.u32 %v2196, 16
        %v2211 = vrot.slane %v2209, 4
        %v2212 = vor.u32 %v2208, %v2211
        %v2213 = vsel %vm795, %v2204, %v2212
        %v2231 = vunpack.c.l.b16 %v2065
        %v2232 = vunpack.c.l.b16 %v2066
        %v2233 = vunpack.c.l.b16 %v2067
        %v2234 = vunpack.c.l.b16 %v2068
        %v2235 = vunpack.c.l.b16 %v2069
        %v2236 = vunpack.c.l.b16 %v2070
        %v2237 = vunpack.c.l.b16 %v2071
        %v2238 = vunpack.c.l.b16 %v2072
        %v2239 = vunpack.c.l.b16 %v2073
        %v2240 = vunpack.c.l.b16 %v2074
        %v2241 = vunpack.c.l.b16 %v2075
        %v2242 = vunpack.c.l.b16 %v2076
        %v2243 = vunpack.c.l.b16 %v2077
        %v2244 = vunpack.c.l.b16 %v2078
        %v2245 = vunpack.c.l.b16 %v2079
        %v2246 = vunpack.c.l.b16 %v2080
        %v2247 = vpack.c.b16 %v2232, %v2231
        %v2248 = vpack.c.b16 %v2234, %v2233
        %v2249 = vpack.c.b16 %v2236, %v2235
        %v2250 = vpack.c.b16 %v2238, %v2237
        %v2251 = vpack.c.b16 %v2240, %v2239
        %v2252 = vpack.c.b16 %v2242, %v2241
        %v2253 = vpack.c.b16 %v2244, %v2243
        %v2254 = vpack.c.b16 %v2246, %v2245
        %2263 = vmatprep.subr.bf16.mxu0 0
        %2264 = vmatpush1.bf16.msra.mxu0 %v2254
        %2265 = vmatprep.subr.bf16.mxu0 0
        %2266 = vmatpush1.bf16.msra.mxu0 %v2253
        %2267 = vmatprep.subr.bf16.mxu0 0
        %2268 = vmatpush1.bf16.msra.mxu0 %v2252
        %2269 = vmatprep.subr.bf16.mxu0 0
        %2270 = vmatpush1.bf16.msra.mxu0 %v2251
        %2271 = vmatprep.subr.bf16.mxu0 0
        %2272 = vmatpush1.bf16.msra.mxu0 %v2250
        %2273 = vmatprep.subr.bf16.mxu0 0
        %2274 = vmatpush1.bf16.msra.mxu0 %v2249
        %2275 = vmatprep.subr.bf16.mxu0 0
        %2276 = vmatpush1.bf16.msra.mxu0 %v2248
        %2277 = vmatprep.subr.bf16.mxu0 0
        %2278 = vmatpush1.bf16.msra.mxu0 %v2247
        %2279 = vmatprep.subr.bf16.mxu0 0
        %2280 = vmatpush2.bf16.msra.mxu0 0
        %2281 = vmatprep.subr.bf16.mxu0 0
        %2282 = vmatpush2.bf16.msra.mxu0 0
        %2283 = vmatprep.subr.bf16.mxu0 0
        %2284 = vmatpush2.bf16.msra.mxu0 0
        %2285 = vmatprep.subr.bf16.mxu0 0
        %2286 = vmatpush2.bf16.msra.mxu0 0
        %2287 = vmatprep.subr.bf16.mxu0 0
        %2288 = vmatpush2.bf16.msra.mxu0 0
        %2289 = vmatprep.subr.bf16.mxu0 0
        %2290 = vmatpush2.bf16.msra.mxu0 0
        %2291 = vmatprep.subr.bf16.mxu0 0
        %2292 = vmatpush2.bf16.msra.mxu0 0
        %2293 = vmatprep.subr.bf16.mxu0 0
        %2294 = vmatpush2.bf16.msra.mxu0 0
        %2295 = vmatprep.mubr.bf16.mxu0 0
        %2296 = vmatmul.mubr.bf16.gmra.mxu0 %v2213
        %v2297 = vpop.f32.mrf.mxu0
        %v2298 = vadd.f32 %v2187, %v2297
        %v2299 = vpop.f32.mrf.mxu0
        %v2300 = vpop.f32.mrf.mxu0
        %v2301 = vadd.f32 %v2190, %v2300
        %v2302 = vpop.f32.mrf.mxu0
        %2303 = vdwg.mxu0
        %v2304 = vld [vmem:[#allocation2 + $0x4] sm:$0xf]
        %v2305 = vld [vmem:[#allocation2 + $0x8] sm:$0xf]
        %v2306 = vld [vmem:[#allocation2 + $0xc] sm:$0x1]
        %s2307 = scalar_lea.vmem [#allocation9], 128
        %v2308 = vld [vmem:[%s2307] sm:$0xf]
        %v2309 = vld [vmem:[%s2307 + $0x4] sm:$0xf]
        %v2310 = vld [vmem:[%s2307 + $0x8] sm:$0xf]
        %v2311 = vld [vmem:[%s2307 + $0xc] sm:$0xf]
        %v2312 = vld [vmem:[%s2307 + $0x10] sm:$0xf]
        %v2313 = vld [vmem:[%s2307 + $0x14] sm:$0xf]
        %v2314 = vld [vmem:[%s2307 + $0x18] sm:$0xf]
        %v2315 = vld [vmem:[%s2307 + $0x1c] sm:$0xf]
        %v2316 = vld [vmem:[%s2307 + $0x20] sm:$0xf]
        %v2317 = vld [vmem:[%s2307 + $0x24] sm:$0xf]
        %v2318 = vld [vmem:[%s2307 + $0x28] sm:$0xf]
        %v2319 = vld [vmem:[%s2307 + $0x2c] sm:$0xf]
        %v2320 = vld [vmem:[%s2307 + $0x30] sm:$0xf]
        %v2321 = vld [vmem:[%s2307 + $0x34] sm:$0xf]
        %v2322 = vld [vmem:[%s2307 + $0x38] sm:$0xf]
        %v2323 = vld [vmem:[%s2307 + $0x3c] sm:$0xf]
        %v2327 = vunpack.c.l.b16 %v2304
        %v2328 = vunpack.c.l.b16 %v2305
        %v2329 = vunpack.c.l.b16 %v2306
        %v2330 = vpack.c.b16 %v2328, %v2327
        %v2331 = vpack.c.b16 %v2329, %v2329
        %v2333 = vshrl.u32 %v2330, 16
        %v2335 = vshll.u32 %v2330, 16
        %v2337 = vrot.slane %v2335, 1
        %v2338 = vor.u32 %v2333, %v2337
        %v2340 = vshll.u32 %v2331, 16
        %v2342 = vrot.slane %v2340, 1
        %v2343 = vsel %vm1043, %v2338, %v2342
        %v2361 = vunpack.c.l.b16 %v2308
        %v2362 = vunpack.c.l.b16 %v2309
        %v2363 = vunpack.c.l.b16 %v2310
        %v2364 = vunpack.c.l.b16 %v2311
        %v2365 = vunpack.c.l.b16 %v2312
        %v2366 = vunpack.c.l.b16 %v2313
        %v2367 = vunpack.c.l.b16 %v2314
        %v2368 = vunpack.c.l.b16 %v2315
        %v2369 = vunpack.c.l.b16 %v2316
        %v2370 = vunpack.c.l.b16 %v2317
        %v2371 = vunpack.c.l.b16 %v2318
        %v2372 = vunpack.c.l.b16 %v2319
        %v2373 = vunpack.c.l.b16 %v2320
        %v2374 = vunpack.c.l.b16 %v2321
        %v2375 = vunpack.c.l.b16 %v2322
        %v2376 = vunpack.c.l.b16 %v2323
        %v2377 = vpack.c.b16 %v2362, %v2361
        %v2378 = vpack.c.b16 %v2364, %v2363
        %v2379 = vpack.c.b16 %v2366, %v2365
        %v2380 = vpack.c.b16 %v2368, %v2367
        %v2381 = vpack.c.b16 %v2370, %v2369
        %v2382 = vpack.c.b16 %v2372, %v2371
        %v2383 = vpack.c.b16 %v2374, %v2373
        %v2384 = vpack.c.b16 %v2376, %v2375
        %2393 = vmatprep.subr.bf16.mxu0 0
        %2394 = vmatpush1.bf16.msra.mxu0 %v2384
        %2395 = vmatprep.subr.bf16.mxu0 0
        %2396 = vmatpush1.bf16.msra.mxu0 %v2383
        %2397 = vmatprep.subr.bf16.mxu0 0
        %2398 = vmatpush1.bf16.msra.mxu0 %v2382
        %2399 = vmatprep.subr.bf16.mxu0 0
        %2400 = vmatpush1.bf16.msra.mxu0 %v2381
        %2401 = vmatprep.subr.bf16.mxu0 0
        %2402 = vmatpush1.bf16.msra.mxu0 %v2380
        %2403 = vmatprep.subr.bf16.mxu0 0
        %2404 = vmatpush1.bf16.msra.mxu0 %v2379
        %2405 = vmatprep.subr.bf16.mxu0 0
        %2406 = vmatpush1.bf16.msra.mxu0 %v2378
        %2407 = vmatprep.subr.bf16.mxu0 0
        %2408 = vmatpush1.bf16.msra.mxu0 %v2377
        %2409 = vmatprep.subr.bf16.mxu0 0
        %2410 = vmatpush2.bf16.msra.mxu0 0
        %2411 = vmatprep.subr.bf16.mxu0 0
        %2412 = vmatpush2.bf16.msra.mxu0 0
        %2413 = vmatprep.subr.bf16.mxu0 0
        %2414 = vmatpush2.bf16.msra.mxu0 0
        %2415 = vmatprep.subr.bf16.mxu0 0
        %2416 = vmatpush2.bf16.msra.mxu0 0
        %2417 = vmatprep.subr.bf16.mxu0 0
        %2418 = vmatpush2.bf16.msra.mxu0 0
        %2419 = vmatprep.subr.bf16.mxu0 0
        %2420 = vmatpush2.bf16.msra.mxu0 0
        %2421 = vmatprep.subr.bf16.mxu0 0
        %2422 = vmatpush2.bf16.msra.mxu0 0
        %2423 = vmatprep.subr.bf16.mxu0 0
        %2424 = vmatpush2.bf16.msra.mxu0 0
        %2425 = vmatprep.mubr.bf16.mxu0 0
        %2426 = vmatmul.mubr.bf16.gmra.mxu0 %v2343
        %v2427 = vpop.f32.mrf.mxu0
        %v2428 = vadd.f32 0.0, %v2427
        %v2429 = vpop.f32.mrf.mxu0
        %v2430 = vpop.f32.mrf.mxu0
        %v2431 = vadd.f32 0.0, %v2430
        %v2432 = vpop.f32.mrf.mxu0
        %2433 = vdwg.mxu0
        %v2434 = vadd.f32 %v2298, %v2428
        %v2435 = vadd.f32 %v2301, %v2431
        %v2436 = vld [vmem:[%s8] sm:$0x1]
        %v2438 = vlaneseq
        %v2439 = vshrl.u32 %v2438, 7
        %v2440 = vsub.s32 0, %v2439
        %v2441 = vrot.slane %v2436, %v2440
        %v2443 = vmul.f32 %v2434, %v2441
        %v2444 = vmul.f32 %v2435, %v2441
        %v2445 = vld [vmem:[%s9] sm:$0x1]
        %v2447 = vlaneseq
        %v2448 = vshrl.u32 %v2447, 7
        %v2449 = vsub.s32 0, %v2448
        %v2450 = vrot.slane %v2445, %v2449
        %v2452 = vadd.f32 %v2443, %v2450
        %v2453 = vadd.f32 %v2444, %v2450
        %v2454 = vld [vmem:[%s458] sm:$0xf]
        %v2455 = vld [vmem:[%s458 + $0x4] sm:$0xf]
        %v2456 = vld [vmem:[#allocation11] sm:$0xf]
        %v2457 = vld [vmem:[#allocation11 + $0x4] sm:$0xf]
        %v2458 = vld [vmem:[#allocation11 + $0x8] sm:$0xf]
        %v2459 = vld [vmem:[#allocation11 + $0xc] sm:$0xf]
        %v2460 = vld [vmem:[#allocation11 + $0x10] sm:$0xf]
        %v2461 = vld [vmem:[#allocation11 + $0x14] sm:$0xf]
        %v2462 = vld [vmem:[#allocation11 + $0x18] sm:$0xf]
        %v2463 = vld [vmem:[#allocation11 + $0x1c] sm:$0xf]
        %v2464 = vld [vmem:[#allocation11 + $0x20] sm:$0xf]
        %v2465 = vld [vmem:[#allocation11 + $0x24] sm:$0xf]
        %v2466 = vld [vmem:[#allocation11 + $0x28] sm:$0xf]
        %v2467 = vld [vmem:[#allocation11 + $0x2c] sm:$0xf]
        %v2468 = vld [vmem:[#allocation11 + $0x30] sm:$0xf]
        %v2469 = vld [vmem:[#allocation11 + $0x34] sm:$0xf]
        %v2470 = vld [vmem:[#allocation11 + $0x38] sm:$0xf]
        %v2471 = vld [vmem:[#allocation11 + $0x3c] sm:$0xf]
        %v2474 = vunpack.c.l.b16 %v2454
        %v2475 = vunpack.c.l.b16 %v2455
        %v2476 = vpack.c.b16 %v2475, %v2474
        %v2494 = vunpack.c.l.b16 %v2456
        %v2495 = vunpack.c.l.b16 %v2457
        %v2496 = vunpack.c.l.b16 %v2458
        %v2497 = vunpack.c.l.b16 %v2459
        %v2498 = vunpack.c.l.b16 %v2460
        %v2499 = vunpack.c.l.b16 %v2461
        %v2500 = vunpack.c.l.b16 %v2462
        %v2501 = vunpack.c.l.b16 %v2463
        %v2502 = vunpack.c.l.b16 %v2464
        %v2503 = vunpack.c.l.b16 %v2465
        %v2504 = vunpack.c.l.b16 %v2466
        %v2505 = vunpack.c.l.b16 %v2467
        %v2506 = vunpack.c.l.b16 %v2468
        %v2507 = vunpack.c.l.b16 %v2469
        %v2508 = vunpack.c.l.b16 %v2470
        %v2509 = vunpack.c.l.b16 %v2471
        %v2510 = vpack.c.b16 %v2495, %v2494
        %v2511 = vpack.c.b16 %v2497, %v2496
        %v2512 = vpack.c.b16 %v2499, %v2498
        %v2513 = vpack.c.b16 %v2501, %v2500
        %v2514 = vpack.c.b16 %v2503, %v2502
        %v2515 = vpack.c.b16 %v2505, %v2504
        %v2516 = vpack.c.b16 %v2507, %v2506
        %v2517 = vpack.c.b16 %v2509, %v2508
        %2526 = vmatprep.subr.bf16.mxu0 0
        %2527 = vmatpush1.bf16.msra.mxu0 %v2517
        %2528 = vmatprep.subr.bf16.mxu0 0
        %2529 = vmatpush1.bf16.msra.mxu0 %v2516
        %2530 = vmatprep.subr.bf16.mxu0 0
        %2531 = vmatpush1.bf16.msra.mxu0 %v2515
        %2532 = vmatprep.subr.bf16.mxu0 0
        %2533 = vmatpush1.bf16.msra.mxu0 %v2514
        %2534 = vmatprep.subr.bf16.mxu0 0
        %2535 = vmatpush1.bf16.msra.mxu0 %v2513
        %2536 = vmatprep.subr.bf16.mxu0 0
        %2537 = vmatpush1.bf16.msra.mxu0 %v2512
        %2538 = vmatprep.subr.bf16.mxu0 0
        %2539 = vmatpush1.bf16.msra.mxu0 %v2511
        %2540 = vmatprep.subr.bf16.mxu0 0
        %2541 = vmatpush1.bf16.msra.mxu0 %v2510
        %2542 = vmatprep.subr.bf16.mxu0 0
        %2543 = vmatpush2.bf16.msra.mxu0 0
        %2544 = vmatprep.subr.bf16.mxu0 0
        %2545 = vmatpush2.bf16.msra.mxu0 0
        %2546 = vmatprep.subr.bf16.mxu0 0
        %2547 = vmatpush2.bf16.msra.mxu0 0
        %2548 = vmatprep.subr.bf16.mxu0 0
        %2549 = vmatpush2.bf16.msra.mxu0 0
        %2550 = vmatprep.subr.bf16.mxu0 0
        %2551 = vmatpush2.bf16.msra.mxu0 0
        %2552 = vmatprep.subr.bf16.mxu0 0
        %2553 = vmatpush2.bf16.msra.mxu0 0
        %2554 = vmatprep.subr.bf16.mxu0 0
        %2555 = vmatpush2.bf16.msra.mxu0 0
        %2556 = vmatprep.subr.bf16.mxu0 0
        %2557 = vmatpush2.bf16.msra.mxu0 0
        %2558 = vmatprep.mubr.bf16.mxu0 0
        %2559 = vmatmul.mubr.bf16.gmra.mxu0 %v2476
        %v2560 = vpop.f32.mrf.mxu0
        %v2561 = vadd.f32 0.0, %v2560
        %v2562 = vpop.f32.mrf.mxu0
        %v2563 = vpop.f32.mrf.mxu0
        %v2564 = vadd.f32 0.0, %v2563
        %v2565 = vpop.f32.mrf.mxu0
        %2566 = vdwg.mxu0
        %v2567 = vld [vmem:[%s11] sm:$0x1]
        %v2569 = vlaneseq
        %v2570 = vshrl.u32 %v2569, 7
        %v2571 = vsub.s32 0, %v2570
        %v2572 = vrot.slane %v2567, %v2571
        %v2574 = vmul.f32 %v2561, %v2572
        %v2575 = vmul.f32 %v2564, %v2572
        %v2576 = vld [vmem:[%s12] sm:$0x1]
        %v2578 = vlaneseq
        %v2579 = vshrl.u32 %v2578, 7
        %v2580 = vsub.s32 0, %v2579
        %v2581 = vrot.slane %v2576, %v2580
        %v2583 = vadd.f32 %v2574, %v2581
        %v2584 = vadd.f32 %v2575, %v2581
        %v2585 = vadd.f32 %v2452, %v2583
        %v2586 = vadd.f32 %v2453, %v2584
        %v2587 = vmax.f32 %v2585, 0.0
        %v2588 = vmax.f32 %v2586, 0.0
        %v2589 = vpack.c.bf16 %v2588, %v2587
        %v2591 = vunpack.c.l.b16 %v2589
        %v2592 = vunpack.c.h.b16 %v2589
        %v2593 = vpack.c.b16 %v2591, %v2591
        %v2594 = vpack.c.b16 %v2592, %v2592
        %2597 = vst [vmem:[%s516] sm:$0xf] %v2593
        %2598 = vst [vmem:[%s516 + $0x4] sm:$0xf] %v2594
        %s2599 = sand.u32 %s318, 1
        %s2600 = scalar_lea.sflag [#allocation5], %s2599
        %s2601 = sand.u32 %s318, 1
        %s2602 = smul.addr %s2601, 8
        %s2603 = scalar_lea.vmem [#allocation12], %s2602
        // Predicated region
        $region93: #{tpu_custom_call.1} parent=71 // pred_check
          %p2604 = pneg %p328
        $region94: #{tpu_custom_call.1} parent=71 // pred_check_branch
          %2606 = sbr.rel (%p2604) target = $region96
        $region95: #{tpu_custom_call.1} parent=71 // pred_region
          %s2608 = ssub.s32 128, 128
          %2609 = vsyncadd %s2600, %s2608
          %s2610 = smul.addr %s32, 2
          %s2611 = smul.addr %s2610, 64
          %s2612 = scalar_lea.hbm %s13, %s2611
          %s2613 = sshll.u32 %s2603, 4
          %s2614 = int_to_ptr.vmem [resolvable:$true] %s2613
          %2619 = dma.vmem_to_hbm [thread:$0]  %s2614, 128, %s2612, %s2600, 64, 64, 4
        $region96: #{tpu_custom_call.1} parent=71 // pred_fallthru
          _
      $region72: #{tpu_custom_call.1} parent=5 // pred_fallthru
        _
      %p2620 = scmp.le.s32.totalorder 2, %s27
      // Predicated region
      $region97: #{tpu_custom_call.1} parent=5 // pred_check
        %p2621 = pneg %p2620
      $region98: #{tpu_custom_call.1} parent=5 // pred_check_branch
        %2623 = sbr.rel (%p2621) target = $region100
      $region99: #{tpu_custom_call.1} parent=5 // pred_region
        %s2624 = ssub.s32 %s27, 2
        // Predicated region
        $region101: #{tpu_custom_call.1} parent=99 // pred_check
          %p2625 = pneg %p334
        $region102: #{tpu_custom_call.1} parent=99 // pred_check_branch
          %2627 = sbr.rel (%p2625) target = $region104
        $region103: #{tpu_custom_call.1} parent=99 // pred_region
          %s2628 = sand.u32 %s319, 1
          %s2629 = scalar_lea.sflag [#allocation5], %s2628
          %s2630 = sand.u32 %s319, 1
          %s2631 = smul.addr %s2630, 8
          %s2632 = scalar_lea.vmem [#allocation12], %s2631
          %2633 = dma.done %s2629, 128
        $region104: #{tpu_custom_call.1} parent=99 // pred_fallthru
          _
      $region100: #{tpu_custom_call.1} parent=5 // pred_fallthru
        _
    $region6: #{tpu_custom_call.1} parent=1 // loop_footer
      %s31 = sadd.s32 1, %s27
    $region7: #{tpu_custom_call.1} parent=1 // loop_footer_branch
      %26 = sbr.rel target = $region3
    $region8: #{tpu_custom_call.1} parent=1 // loop_exit
      _
    %2634 = vsyncpa [#allocation4], 1
    %s2635 = scalar_lea.sflag [#allocation4], 1
    %2636 = vsyncpa %s2635, 1
    %2637 = vsyncpa [#allocation7], 1
    %2638 = vsyncpa [#allocation10], 1
    %2639 = vsyncpa [#allocation5], 1
    %s2640 = scalar_lea.sflag [#allocation5], 1
    %2641 = vsyncpa %s2640, 1

</llo_original>
